<compile_context>
chip_gen: v5e
topology: v5e:2x2
jax: 0.10.0
libtpu: 0.0.40
codegen_flags: <defaults>
</compile_context>

<pallas_src>
import functools
import math

import jax
import jax.numpy as jnp
from jax.experimental import pallas as pl
from jax.experimental.pallas import tpu as pltpu


def _pos_embed_sine_kernel(inv_ref, phase_ref, y_ref, x_ref, o_ref, *, num_pos_feats):
    # inv_ref:   (F, 1)        1 / dim_t   (dim_t[2k] == dim_t[2k+1])
    # phase_ref: (F, 1)        0 for even channels, pi/2 for odd (cos(t) == sin(t + pi/2))
    # y_ref:     (1, 1, N)     flattened y_embed tile (N = tile_h * W)
    # x_ref:     (1, 1, N)     flattened x_embed tile
    # o_ref:     (1, 2F, N)    channel-major output tile
    F = num_pos_feats
    inv = inv_ref[...]                                   # (F, 1)
    ph = phase_ref[...]                                  # (F, 1)
    y = y_ref[0]                                         # (1, N)
    x = x_ref[0]                                         # (1, N)
    # (F,1) * (1,N) -> (F,N): broadcast multiply + add + one sin per channel.
    # NOTE: relies on dim_t[2k] == dim_t[2k+1] (floor(i/2) in the dim_t formula) and on
    # cos(t) == sin(t + pi/2) to reproduce PyTorch's interleaved sin/cos exactly.
    o_ref[0, :F, :] = jnp.sin(y * inv + ph)              # pos_y channels [0, F)
    o_ref[0, F:, :] = jnp.sin(x * inv + ph)              # pos_x channels [F, 2F)


def _pick_tile_h(H, W, num_pos_feats, tile_h=None):
    """Largest row tile tH <= requested such that H % tH == 0 and the flattened lane
    dim tH*W is 128-aligned (or the tile spans all of H)."""
    if tile_h is None:
        budget = 2 * 1024 * 1024  # ~2 MiB output block (f32, 2*num_pos_feats channels)
        tile_h = max(1, budget // (4 * 2 * num_pos_feats * W))
    tile_h = max(1, min(int(tile_h), H))
    for th in range(tile_h, 0, -1):
        if H % th == 0 and (th == H or (th * W) % 128 == 0):
            return th
    return H


def position_embedding_sine(mask, num_pos_feats=64, temperature=10000,
                            normalize=False, scale=None, tile_h=None):
    """mask: (B, H, W) bool, True = padded pixel. Returns (B, 2*num_pos_feats, H, W) f32."""
    if scale is not None and normalize is False:
        raise ValueError('normalize should be True if scale is passed')
    if scale is None:
        scale = 2 * math.pi
    if num_pos_feats % 2 != 0:
        raise ValueError('num_pos_feats must be even')

    B, H, W = mask.shape
    F = num_pos_feats

    # --- cheap per-image prep in plain JAX (hoisted out of the kernel, per review) ---
    not_mask = (~mask).astype(jnp.float32)
    y_embed = jnp.cumsum(not_mask, axis=1)
    x_embed = jnp.cumsum(not_mask, axis=2)
    if normalize:
        eps = 1e-6
        y_embed = y_embed / (y_embed[:, -1:, :] + eps) * scale
        x_embed = x_embed / (x_embed[:, :, -1:] + eps) * scale
    # flatten H,W into one lane-dense axis (free reshape)
    y_flat = y_embed.reshape(B, 1, H * W)
    x_flat = x_embed.reshape(B, 1, H * W)

    # per-channel constants: dim_t exactly as the reference, then reciprocal + phase
    idx = jnp.arange(F, dtype=jnp.float32)
    dim_t = temperature ** (2.0 * jnp.floor(idx / 2.0) / F)                 # (F,)
    inv_dim_t = (1.0 / dim_t).astype(jnp.float32).reshape(F, 1)
    phase = jnp.where(jnp.arange(F) % 2 == 0, 0.0,
                      math.pi / 2.0).astype(jnp.float32).reshape(F, 1)

    th = _pick_tile_h(H, W, F, tile_h)
    n_h = H // th
    N = th * W  # lane-dense block width (multiple of 128, or the full image)

    out = pl.pallas_call(
        functools.partial(_pos_embed_sine_kernel, num_pos_feats=F),
        out_shape=jax.ShapeDtypeStruct((B, 2 * F, H * W), jnp.float32),
        grid_spec=pltpu.PrefetchScalarGridSpec(
            num_scalar_prefetch=0,
            grid=(B, n_h),
            in_specs=[
                pl.BlockSpec((F, 1), lambda b, h: (0, 0)),        # inv_dim_t (resident)
                pl.BlockSpec((F, 1), lambda b, h: (0, 0)),        # phase     (resident)
                pl.BlockSpec((1, 1, N), lambda b, h: (b, 0, h)),  # y_embed tile
                pl.BlockSpec((1, 1, N), lambda b, h: (b, 0, h)),  # x_embed tile
            ],
            out_specs=pl.BlockSpec((1, 2 * F, N), lambda b, h: (b, 0, h)),
        ),
        compiler_params=pltpu.CompilerParams(
            dimension_semantics=("parallel", "parallel")),
    )(inv_dim_t, phase, y_flat, x_flat)

    # already channel-major: (B, 2F, H*W) -> (B, 2F, H, W) is a free reshape (no transpose)
    return out.reshape(B, 2 * F, H, W)


def _reference(mask, num_pos_feats, temperature, normalize, scale):
    """Pure-JAX reference mirroring the PyTorch forward."""
    if scale is None:
        scale = 2 * math.pi
    not_mask = (~mask).astype(jnp.float32)
    y_embed = jnp.cumsum(not_mask, axis=1)
    x_embed = jnp.cumsum(not_mask, axis=2)
    if normalize:
        eps = 1e-6
        y_embed = y_embed / (y_embed[:, -1:, :] + eps) * scale
        x_embed = x_embed / (x_embed[:, :, -1:] + eps) * scale
    i = jnp.arange(num_pos_feats, dtype=jnp.float32)
    dim_t = temperature ** (2.0 * jnp.floor(i / 2.0) / num_pos_feats)
    pos_x = x_embed[:, :, :, None] / dim_t
    pos_y = y_embed[:, :, :, None] / dim_t
    pos_x = jnp.stack((jnp.sin(pos_x[..., 0::2]), jnp.cos(pos_x[..., 1::2])),
                      axis=4).reshape(*pos_x.shape[:3], -1)
    pos_y = jnp.stack((jnp.sin(pos_y[..., 0::2]), jnp.cos(pos_y[..., 1::2])),
                      axis=4).reshape(*pos_y.shape[:3], -1)
    pos = jnp.concatenate((pos_y, pos_x), axis=3)
    return jnp.transpose(pos, (0, 3, 1, 2))


if __name__ == "__main__":
    key = jax.random.PRNGKey(0)

    # --- Test 1: defaults (normalize=False), random mask, single H tile ---
    B, H, W = 2, 16, 16
    F = 32  # output channels = 64
    mask = jax.random.bernoulli(key, p=0.3, shape=(B, H, W))
    out = position_embedding_sine(mask, num_pos_feats=F, temperature=10000,
                                  normalize=False)
    out = jax.block_until_ready(out)
    ref = _reference(mask, F, 10000, False, None)
    assert out.shape == (B, 2 * F, H, W), out.shape
    assert jnp.allclose(out, ref, atol=1e-5, rtol=1e-5), \
        float(jnp.max(jnp.abs(out - ref)))

    # --- Test 2: normalize=True with DETR-style padding (bottom rows / right cols
    #     fully masked) and explicit H-tiling so the multi-tile grid path runs ---
    B2, H2, W2, F2 = 1, 32, 32, 64
    mask2 = jnp.zeros((B2, H2, W2), dtype=bool)
    mask2 = mask2.at[:, 24:, :].set(True)
    mask2 = mask2.at[:, :, 28:].set(True)
    out2 = position_embedding_sine(mask2, num_pos_feats=F2, temperature=10000,
                                   normalize=True, scale=2 * math.pi, tile_h=8)
    out2 = jax.block_until_ready(out2)
    ref2 = _reference(mask2, F2, 10000, True, 2 * math.pi)
    assert out2.shape == (B2, 2 * F2, H2, W2), out2.shape
    assert jnp.allclose(out2, ref2, atol=1e-5, rtol=1e-5), \
        float(jnp.max(jnp.abs(out2 - ref2)))

    print("KERNEL_OK")
</pallas_src>

<mosaic_0001>
module attributes {stable_mosaic.version = 11 : i64} {
  func.func @_pos_embed_sine_kernel(%arg0: i32, %arg1: i32, %arg2: memref<32x1xf32, #tpu.memory_space<vmem>>, %arg3: memref<32x1xf32, #tpu.memory_space<vmem>>, %arg4: memref<1x1x256xf32, #tpu.memory_space<vmem>>, %arg5: memref<1x1x256xf32, #tpu.memory_space<vmem>>, %arg6: memref<1x64x256xf32, #tpu.memory_space<vmem>>) attributes {dimension_semantics = [#tpu.dimension_semantics<parallel>, #tpu.dimension_semantics<parallel>], iteration_bounds = array<i64: 2, 1>, scalar_prefetch = 0 : i64, scratch_operands = 0 : i64, tpu.core_type = #tpu.core_type<tc>, window_params = [{pipeline_mode = #tpu.pipeline_mode<synchronous>, transform_indices = @transform_0, window_bounds = array<i64: 32, 1>}, {pipeline_mode = #tpu.pipeline_mode<synchronous>, transform_indices = @transform_1, window_bounds = array<i64: 32, 1>}, {transform_indices = @transform_2, window_bounds = array<i64: 1, 1, 256>}, {transform_indices = @transform_3, window_bounds = array<i64: 1, 1, 256>}, {transform_indices = @transform_4, window_bounds = array<i64: 1, 64, 256>}]} {
    %c0 = arith.constant 0 : index
    %c0_0 = arith.constant 0 : index
    %0 = vector.load %arg2[%c0, %c0_0] : memref<32x1xf32, #tpu.memory_space<vmem>>, vector<32x1xf32>
    %c0_1 = arith.constant 0 : index
    %c0_2 = arith.constant 0 : index
    %1 = vector.load %arg3[%c0_1, %c0_2] : memref<32x1xf32, #tpu.memory_space<vmem>>, vector<32x1xf32>
    %c0_3 = arith.constant 0 : index
    %c0_4 = arith.constant 0 : index
    %c0_5 = arith.constant 0 : index
    %2 = vector.load %arg4[%c0_3, %c0_4, %c0_5] : memref<1x1x256xf32, #tpu.memory_space<vmem>>, vector<1x1x256xf32>
    %3 = vector.shape_cast %2 : vector<1x1x256xf32> to vector<1x256xf32>
    %c0_6 = arith.constant 0 : index
    %c0_7 = arith.constant 0 : index
    %c0_8 = arith.constant 0 : index
    %4 = vector.load %arg5[%c0_6, %c0_7, %c0_8] : memref<1x1x256xf32, #tpu.memory_space<vmem>>, vector<1x1x256xf32>
    %5 = vector.shape_cast %4 : vector<1x1x256xf32> to vector<1x256xf32>
    %6 = vector.broadcast %3 : vector<1x256xf32> to vector<32x256xf32>
    %7 = vector.broadcast %0 : vector<32x1xf32> to vector<32x256xf32>
    %8 = arith.mulf %6, %7 : vector<32x256xf32>
    %9 = vector.broadcast %1 : vector<32x1xf32> to vector<32x256xf32>
    %10 = arith.addf %8, %9 : vector<32x256xf32>
    %11 = math.sin %10 : vector<32x256xf32>
    %c0_9 = arith.constant 0 : index
    %c0_10 = arith.constant 0 : index
    %c0_11 = arith.constant 0 : index
    %12 = vector.load %arg6[%c0_9, %c0_10, %c0_11] : memref<1x64x256xf32, #tpu.memory_space<vmem>>, vector<1x32x256xf32>
    %13 = vector.shape_cast %12 : vector<1x32x256xf32> to vector<32x256xf32>
    %14 = vector.shape_cast %11 : vector<32x256xf32> to vector<1x32x256xf32>
    tpu.vector_store %arg6[%c0_9, %c0_10, %c0_11], %14 {strides = array<i32>} : memref<1x64x256xf32, #tpu.memory_space<vmem>>, vector<1x32x256xf32>,
    %15 = vector.broadcast %5 : vector<1x256xf32> to vector<32x256xf32>
    %16 = vector.broadcast %0 : vector<32x1xf32> to vector<32x256xf32>
    %17 = arith.mulf %15, %16 : vector<32x256xf32>
    %18 = vector.broadcast %1 : vector<32x1xf32> to vector<32x256xf32>
    %19 = arith.addf %17, %18 : vector<32x256xf32>
    %20 = math.sin %19 : vector<32x256xf32>
    %c0_12 = arith.constant 0 : index
    %c32 = arith.constant 32 : index
    %c0_13 = arith.constant 0 : index
    %21 = vector.load %arg6[%c0_12, %c32, %c0_13] : memref<1x64x256xf32, #tpu.memory_space<vmem>>, vector<1x32x256xf32>
    %22 = vector.shape_cast %21 : vector<1x32x256xf32> to vector<32x256xf32>
    %23 = vector.shape_cast %20 : vector<32x256xf32> to vector<1x32x256xf32>
    tpu.vector_store %arg6[%c0_12, %c32, %c0_13], %23 {strides = array<i32>} : memref<1x64x256xf32, #tpu.memory_space<vmem>>, vector<1x32x256xf32>,
    return
  }
  func.func @transform_0(%arg0: i32, %arg1: i32) -> (i32, i32) {
    %c0_i32 = arith.constant 0 : i32
    %c0_i32_0 = arith.constant 0 : i32
    %c0_i32_1 = arith.constant 0 : i32
    return %c0_i32, %c0_i32_0 : i32, i32
  }
  func.func @transform_1(%arg0: i32, %arg1: i32) -> (i32, i32) {
    %c0_i32 = arith.constant 0 : i32
    %c0_i32_0 = arith.constant 0 : i32
    %c0_i32_1 = arith.constant 0 : i32
    return %c0_i32, %c0_i32_0 : i32, i32
  }
  func.func @transform_2(%arg0: i32, %arg1: i32) -> (i32, i32, i32) {
    %c0_i32 = arith.constant 0 : i32
    %c0_i32_0 = arith.constant 0 : i32
    return %arg0, %c0_i32, %arg1 : i32, i32, i32
  }
  func.func @transform_3(%arg0: i32, %arg1: i32) -> (i32, i32, i32) {
    %c0_i32 = arith.constant 0 : i32
    %c0_i32_0 = arith.constant 0 : i32
    return %arg0, %c0_i32, %arg1 : i32, i32, i32
  }
  func.func @transform_4(%arg0: i32, %arg1: i32) -> (i32, i32, i32) {
    %c0_i32 = arith.constant 0 : i32
    %c0_i32_0 = arith.constant 0 : i32
    return %arg0, %c0_i32, %arg1 : i32, i32, i32
  }
}

</mosaic_0001>

<llo_original>
// kernel: tpu_custom_call.1
$region0: #{tpu_custom_call.1}
  #allocation0 [shape = 'u32[]', space=smem, size = 0x4, offset = 0x4, fixed_abs, tag = 'smem constant byte address 0x4 - core index']
  #allocation1 [shape = 'u32[72,128]{1,0:T(1,128)}', space=vmem, size = 0x9000, scoped, tag = 'internal scratch']
  %s0 = inlined_call_operand.vmem [shape: f32[32,1], index: 0, kind: input, shape index: {}]
  %s1 = inlined_call_operand.vmem [shape: f32[32,1], index: 1, kind: input, shape index: {}]
  %s2 = inlined_call_operand.vmem [shape: f32[2,1,256], index: 2, kind: input, shape index: {}]
  %s3 = inlined_call_operand.vmem [shape: f32[2,1,256], index: 3, kind: input, shape index: {}]
  %s4 = inlined_call_operand.hbm [shape: f32[2,64,256], index: 4, kind: output, shape index: {}]
  %s5 = sld [smem:[#allocation0]]
  $region49: #{tpu_custom_call.1} parent=0
    _
  %s7 = ssub.s32 1, %s5
  %s8 = scalar_select 0, %s7, %s5
  $region1: #{tpu_custom_call.1} parent=0
    #allocation2 [shape = 'u8[131072]{0}', space=vmem, size = 0x20000, scoped, tag = 'output window, operand 0']
    #allocation3 [shape = 's32[2]{0}', space=sflag, size = 0x8, scoped, tag = 'scoped memory for tpu_custom_call.1']
    %9 = vsyncpa [#allocation3], 0
    %s10 = scalar_lea.sflag [#allocation3], 1
    %11 = vsyncpa %s10, 0
    loop: start=0, step=1, limit=4
    $region2: #{tpu_custom_call.1} parent=1 // loop_pre_header
      _
    $region3: #{tpu_custom_call.1} parent=1 // loop_header
      %s13 = sphi 0, %s17
      %p14 = scmp.ge.s32.totalorder %s13, 4
      %s20 = sphi 0, %s32
      %s21 = sphi 0, %s28
      %s22 = sphi 0, %s20
      %s23 = sphi 0, %s21
      %s24 = sphi 0, %s22
      %s25 = sphi 0, %s23
      %s33 = sphi 0, %s33
      %s35 = sphi 0, %s33
      %s36 = sphi 0, %s35
      %s50 = sphi 0, %s36
      %s54 = sphi 0, %s54
      %s56 = sphi 0, %s54
      %s57 = sphi 0, %s56
      %s71 = sphi 0, %s57
      %s79 = sphi 0, %s81
      %s82 = sphi 0, %s79
      %s83 = sphi 0, %s82
      %s99 = sphi 0, %s83
      %s107 = sphi 0, %s109
      %s110 = sphi 0, %s107
      %s111 = sphi 0, %s110
      %s127 = sphi 0, %s111
      %s135 = sphi 0, %s137
      %s138 = sphi 0, %s135
      %s139 = sphi 0, %s138
      %s155 = sphi 0, %s139
    $region4: #{tpu_custom_call.1} parent=1 // loop_header_branch
      %16 = sbr.rel (%p14) target = $region8
    $region5: #{tpu_custom_call.1} parent=1 // loop_body
      %s18 = ssub.s32 %s13, 1
      %s19 = ssub.s32 %s13, 2
      %s26 = sadd.s32 1, %s21
      %p27 = scmp.ge.s32.totalorder %s26, 1
      %s28 = scalar_select %p27, 0, %s26
      %s29 = sadd.s32 1, %s20
      %s30 = scalar_select %p27, %s29, %s20
      %p31 = scmp.ge.s32.totalorder %s30, 2
      %s32 = scalar_select %p31, 0, %s30
      %s34 = sadd.s32 %s33, 1
      %p37 = scmp.eq.s32.totalorder %s13, 1
      %p38 = scmp.ne.s32.totalorder %s33, %s35
      %p39 = scmp.eq.s32.totalorder %s13, 0
      %p40 = por %p38, %p39
      %p41 = scmp.ne.s32.totalorder %s33, %s35
      %p42 = scmp.eq.s32.totalorder %s18, 1
      %p43 = por %p41, %p42
      %p44 = scmp.ne.s32.totalorder %s35, %s36
      %p45 = scmp.eq.s32.totalorder %s18, 0
      %p46 = por %p44, %p45
      %p47 = scmp.ne.s32.totalorder %s35, %s36
      %p48 = scmp.eq.s32.totalorder %s19, 1
      %p49 = por %p47, %p48
      %p51 = scmp.ne.s32.totalorder %s36, %s50
      %p52 = scmp.eq.s32.totalorder %s19, 0
      %p53 = por %p51, %p52
      %s55 = sadd.s32 %s54, 1
      %p58 = scmp.eq.s32.totalorder %s13, 1
      %p59 = scmp.ne.s32.totalorder %s54, %s56
      %p60 = scmp.eq.s32.totalorder %s13, 0
      %p61 = por %p59, %p60
      %p62 = scmp.ne.s32.totalorder %s54, %s56
      %p63 = scmp.eq.s32.totalorder %s18, 1
      %p64 = por %p62, %p63
      %p65 = scmp.ne.s32.totalorder %s56, %s57
      %p66 = scmp.eq.s32.totalorder %s18, 0
      %p67 = por %p65, %p66
      %p68 = scmp.ne.s32.totalorder %s56, %s57
      %p69 = scmp.eq.s32.totalorder %s19, 1
      %p70 = por %p68, %p69
      %p72 = scmp.ne.s32.totalorder %s57, %s71
      %p73 = scmp.eq.s32.totalorder %s19, 0
      %p74 = por %p72, %p73
      %s75 = ssub.s32 %s20, %s32
      %s76 = ssub.s32 %s21, %s28
      %s77 = sor.u32 %s75, %s76
      %p78 = scmp.eq.s32.totalorder %s77, 0
      %s80 = sadd.s32 %s79, 1
      %s81 = scalar_select %p78, %s79, %s80
      %p84 = pneg %p78
      %p85 = scmp.eq.s32.totalorder %s13, 1
      %p86 = por %p84, %p85
      %p87 = scmp.ne.s32.totalorder %s79, %s82
      %p88 = scmp.eq.s32.totalorder %s13, 0
      %p89 = por %p87, %p88
      %p90 = scmp.ne.s32.totalorder %s79, %s82
      %p91 = scmp.eq.s32.totalorder %s18, 1
      %p92 = por %p90, %p91
      %p93 = scmp.ne.s32.totalorder %s82, %s83
      %p94 = scmp.eq.s32.totalorder %s18, 0
      %p95 = por %p93, %p94
      %p96 = scmp.ne.s32.totalorder %s82, %s83
      %p97 = scmp.eq.s32.totalorder %s19, 1
      %p98 = por %p96, %p97
      %p100 = scmp.ne.s32.totalorder %s83, %s99
      %p101 = scmp.eq.s32.totalorder %s19, 0
      %p102 = por %p100, %p101
      %s103 = ssub.s32 %s20, %s32
      %s104 = ssub.s32 %s21, %s28
      %s105 = sor.u32 %s103, %s104
      %p106 = scmp.eq.s32.totalorder %s105, 0
      %s108 = sadd.s32 %s107, 1
      %s109 = scalar_select %p106, %s107, %s108
      %p112 = pneg %p106
      %p113 = scmp.eq.s32.totalorder %s13, 1
      %p114 = por %p112, %p113
      %p115 = scmp.ne.s32.totalorder %s107, %s110
      %p116 = scmp.eq.s32.totalorder %s13, 0
      %p117 = por %p115, %p116
      %p118 = scmp.ne.s32.totalorder %s107, %s110
      %p119 = scmp.eq.s32.totalorder %s18, 1
      %p120 = por %p118, %p119
      %p121 = scmp.ne.s32.totalorder %s110, %s111
      %p122 = scmp.eq.s32.totalorder %s18, 0
      %p123 = por %p121, %p122
      %p124 = scmp.ne.s32.totalorder %s110, %s111
      %p125 = scmp.eq.s32.totalorder %s19, 1
      %p126 = por %p124, %p125
      %p128 = scmp.ne.s32.totalorder %s111, %s127
      %p129 = scmp.eq.s32.totalorder %s19, 0
      %p130 = por %p128, %p129
      %s131 = ssub.s32 %s20, %s32
      %s132 = ssub.s32 %s21, %s28
      %s133 = sor.u32 %s131, %s132
      %p134 = scmp.eq.s32.totalorder %s133, 0
      %s136 = sadd.s32 %s135, 1
      %s137 = scalar_select %p134, %s135, %s136
      %p140 = pneg %p134
      %p141 = scmp.eq.s32.totalorder %s13, 1
      %p142 = por %p140, %p141
      %p143 = scmp.ne.s32.totalorder %s135, %s138
      %p144 = scmp.eq.s32.totalorder %s13, 0
      %p145 = por %p143, %p144
      %p146 = scmp.ne.s32.totalorder %s135, %s138
      %p147 = scmp.eq.s32.totalorder %s18, 1
      %p148 = por %p146, %p147
      %p149 = scmp.ne.s32.totalorder %s138, %s139
      %p150 = scmp.eq.s32.totalorder %s18, 0
      %p151 = por %p149, %p150
      %p152 = scmp.ne.s32.totalorder %s138, %s139
      %p153 = scmp.eq.s32.totalorder %s19, 1
      %p154 = por %p152, %p153
      %p156 = scmp.ne.s32.totalorder %s139, %s155
      %p157 = scmp.eq.s32.totalorder %s19, 0
      %p158 = por %p156, %p157
      %p159 = scmp.le.s32.totalorder 1, %s13
      %p160 = scmp.lt.s32.totalorder %s13, 3
      %p161 = pnand %p159, %p160
      %p162 = pneg %p161
      // Predicated region
      $region9: #{tpu_custom_call.1} parent=5 // pred_check
        _
      $region10: #{tpu_custom_call.1} parent=5 // pred_check_branch
        %164 = sbr.rel (%p161) target = $region12
      $region11: #{tpu_custom_call.1} parent=5 // pred_region
        %s165 = ssub.s32 %s13, 1
        // Predicated region
        $region13: #{tpu_custom_call.1} parent=11 // pred_check
          %p166 = pneg %p46
        $region14: #{tpu_custom_call.1} parent=11 // pred_check_branch
          %168 = sbr.rel (%p166) target = $region16
        $region15: #{tpu_custom_call.1} parent=11 // pred_region
          _
        $region16: #{tpu_custom_call.1} parent=11 // pred_fallthru
          _
        // Predicated region
        $region17: #{tpu_custom_call.1} parent=11 // pred_check
          %p169 = pneg %p67
        $region18: #{tpu_custom_call.1} parent=11 // pred_check_branch
          %171 = sbr.rel (%p169) target = $region20
        $region19: #{tpu_custom_call.1} parent=11 // pred_region
          _
        $region20: #{tpu_custom_call.1} parent=11 // pred_fallthru
          _
      $region12: #{tpu_custom_call.1} parent=5 // pred_fallthru
        _
      %p172 = scmp.lt.s32.totalorder %s13, 2
      // Predicated region
      $region21: #{tpu_custom_call.1} parent=5 // pred_check
        %p173 = pneg %p172
      $region22: #{tpu_custom_call.1} parent=5 // pred_check_branch
        %175 = sbr.rel (%p173) target = $region24
      $region23: #{tpu_custom_call.1} parent=5 // pred_region
        // Predicated region
        $region25: #{tpu_custom_call.1} parent=23 // pred_check
          %p176 = pneg %p89
        $region26: #{tpu_custom_call.1} parent=23 // pred_check_branch
          %178 = sbr.rel (%p176) target = $region28
        $region27: #{tpu_custom_call.1} parent=23 // pred_region
          %s179 = smul.u32 2, %s21
          %p180 = scmp.lt.s32.totalorder %s20, 1
          %s181 = scalar_select %p180, %s20, 1
          %p182 = scmp.lt.s32.totalorder %s179, 1
          %s183 = scalar_select %p182, %s179, 1
          %s184 = smul.addr %s181, 2
          %s185 = sadd.s32 %s183, %s184
          %s186 = scalar_lea.vmem %s2, %s185
          %s187 = smul.u32 2, %s21
        $region28: #{tpu_custom_call.1} parent=23 // pred_fallthru
          _
        // Predicated region
        $region29: #{tpu_custom_call.1} parent=23 // pred_check
          %p188 = pneg %p117
        $region30: #{tpu_custom_call.1} parent=23 // pred_check_branch
          %190 = sbr.rel (%p188) target = $region32
        $region31: #{tpu_custom_call.1} parent=23 // pred_region
          %s191 = smul.u32 2, %s21
          %p192 = scmp.lt.s32.totalorder %s20, 1
          %s193 = scalar_select %p192, %s20, 1
          %p194 = scmp.lt.s32.totalorder %s191, 1
          %s195 = scalar_select %p194, %s191, 1
          %s196 = smul.addr %s193, 2
          %s197 = sadd.s32 %s195, %s196
          %s198 = scalar_lea.vmem %s3, %s197
          %s199 = smul.u32 2, %s21
        $region32: #{tpu_custom_call.1} parent=23 // pred_fallthru
          _
      $region24: #{tpu_custom_call.1} parent=5 // pred_fallthru
        _
      %p200 = scmp.le.s32.totalorder 1, %s13
      %p201 = scmp.lt.s32.totalorder %s13, 3
      %p202 = pnand %p200, %p201
      %p203 = pneg %p202
      // Predicated region
      $region33: #{tpu_custom_call.1} parent=5 // pred_check
        _
      $region34: #{tpu_custom_call.1} parent=5 // pred_check_branch
        %205 = sbr.rel (%p202) target = $region36
      $region35: #{tpu_custom_call.1} parent=5 // pred_region
        %s206 = ssub.s32 %s13, 1
        %p207 = pneg %p46
        %p208 = pneg %p43
        %p209 = pneg %p67
        %p210 = pneg %p64
        %s211 = smul.u32 2, %s23
        %p212 = scmp.lt.s32.totalorder %s22, 1
        %s213 = scalar_select %p212, %s22, 1
        %p214 = scmp.lt.s32.totalorder %s211, 1
        %s215 = scalar_select %p214, %s211, 1
        %s216 = smul.addr %s213, 2
        %s217 = sadd.s32 %s215, %s216
        %s218 = scalar_lea.vmem %s2, %s217
        %p219 = pneg %p95
        %p220 = pneg %p92
        %s221 = smul.u32 2, %s23
        %p222 = scmp.lt.s32.totalorder %s22, 1
        %s223 = scalar_select %p222, %s22, 1
        %p224 = scmp.lt.s32.totalorder %s221, 1
        %s225 = scalar_select %p224, %s221, 1
        %s226 = smul.addr %s223, 2
        %s227 = sadd.s32 %s225, %s226
        %s228 = scalar_lea.vmem %s3, %s227
        %p229 = pneg %p123
        %p230 = pneg %p120
        %p231 = pneg %p151
        %p232 = pneg %p148
        %s233 = sand.u32 %s138, 1
        %s234 = scalar_lea.sflag [#allocation3], %s233
        %s235 = sand.u32 %s138, 1
        %s236 = smul.addr %s235, 128
        %s237 = scalar_lea.vmem [#allocation2], %s236
        %s238 = smul.u32 2, %s23
        %p239 = scmp.lt.s32.totalorder %s22, 1
        %s240 = scalar_select %p239, %s22, 1
        %p241 = scmp.lt.s32.totalorder %s238, 1
        %s242 = scalar_select %p241, %s238, 1
        %s243 = smul.addr %s240, 2
        %s244 = sadd.s32 %s242, %s243
        %s245 = scalar_lea.vmem %s2, %s244
        %s246 = smul.u32 2, %s23
        %s247 = smul.u32 2, %s23
        %p248 = scmp.lt.s32.totalorder %s22, 1
        %s249 = scalar_select %p248, %s22, 1
        %p250 = scmp.lt.s32.totalorder %s247, 1
        %s251 = scalar_select %p250, %s247, 1
        %s252 = smul.addr %s249, 2
        %s253 = sadd.s32 %s251, %s252
        %s254 = scalar_lea.vmem %s3, %s253
        %s255 = smul.u32 2, %s23
        %s256 = smul.u32 2, %s23
        %v257 = vld [vmem:[%s0] sm:$0xff]
        %v258 = vld [vmem:[%s0 + $0x8] sm:$0xff]
        %v259 = vld [vmem:[%s0 + $0x10] sm:$0xff]
        %v260 = vld [vmem:[%s0 + $0x18] sm:$0xff]
        %v261 = vld [vmem:[%s1] sm:$0xff]
        %v262 = vld [vmem:[%s1 + $0x8] sm:$0xff]
        %v263 = vld [vmem:[%s1 + $0x10] sm:$0xff]
        %v264 = vld [vmem:[%s1 + $0x18] sm:$0xff]
        %v265 = vld [vmem:[%s245] sm:$0x3]
        %v266 = vld [vmem:[%s254] sm:$0x3]
        %v268 = vperm.slane %v265, 0
        %v269 = vperm.slane %v265, 1
        %273 = vset.pattern.permute.xlu0 0
        %274 = vperm.xlu0 %273, %v257
        %v275 = vpop.permute.xlu0 %274
        %278 = vset.pattern.permute.xlu0 0
        %279 = vperm.xlu0 %278, %v258
        %v280 = vpop.permute.xlu0 %279
        %283 = vset.pattern.permute.xlu0 0
        %284 = vperm.xlu0 %283, %v259
        %v285 = vpop.permute.xlu0 %284
        %288 = vset.pattern.permute.xlu0 0
        %289 = vperm.xlu0 %288, %v260
        %v290 = vpop.permute.xlu0 %289
        %v292 = vmul.f32 %v268, %v275
        %v293 = vmul.f32 %v269, %v275
        %v294 = vmul.f32 %v268, %v280
        %v295 = vmul.f32 %v269, %v280
        %v296 = vmul.f32 %v268, %v285
        %v297 = vmul.f32 %v269, %v285
        %v298 = vmul.f32 %v268, %v290
        %v299 = vmul.f32 %v269, %v290
        %301 = vset.pattern.permute.xlu0 0
        %302 = vperm.xlu0 %301, %v261
        %v303 = vpop.permute.xlu0 %302
        %306 = vset.pattern.permute.xlu0 0
        %307 = vperm.xlu0 %306, %v262
        %v308 = vpop.permute.xlu0 %307
        %311 = vset.pattern.permute.xlu0 0
        %312 = vperm.xlu0 %311, %v263
        %v313 = vpop.permute.xlu0 %312
        %316 = vset.pattern.permute.xlu0 0
        %317 = vperm.xlu0 %316, %v264
        %v318 = vpop.permute.xlu0 %317
        %v320 = vadd.f32 %v292, %v303
        %v321 = vadd.f32 %v293, %v303
        %v322 = vadd.f32 %v294, %v308
        %v323 = vadd.f32 %v295, %v308
        %v324 = vadd.f32 %v296, %v313
        %v325 = vadd.f32 %v297, %v313
        %v326 = vadd.f32 %v298, %v318
        %v327 = vadd.f32 %v299, %v318
        %v328 = vand.u32 2147483647, %v320
        %vm329 = vcmp.le.f32.partialorder %v328, 0.7853982
        %vm330 = vcmp.lt.s32.totalorder %v320, 0
        %v331 = vand.u32 %v320, 2139095040
        %v332 = vshrl.u32 %v331, 23
        %v333 = vsub.s32 %v332, 127
        %v334 = vand.u32 2147483647, %v320
        %v335 = vand.u32 %v334, 8388607
        %v336 = vor.u32 %v335, 8388608
        %v337 = vsub.s32 0, %v336
        %v338 = vadd.s32 %v333, 1
        %vm339 = vcmp.gt.s32.totalorder %v338, 0
        %v340 = vsel %vm339, %v338, 0
        %v341 = vshrl.u32 %v340, 5
        %v342 = vand.u32 %v340, 31
        %v343 = vsub.s32 32, %v342
        %v344 = vshrl.u32 683565275, %v343
        %v345 = vshll.u32 683565275, %v342
        %v346 = vshrl.u32 2475754826, %v343
        %v347 = vor.u32 %v345, %v346
        %v348 = vshll.u32 2475754826, %v342
        %v349 = vshrl.u32 2131351028, %v343
        %v350 = vor.u32 %v348, %v349
        %v351 = vshll.u32 2131351028, %v342
        %v352 = vshrl.u32 2102212464, %v343
        %v353 = vor.u32 %v351, %v352
        %v354 = vshll.u32 2102212464, %v342
        %v355 = vshrl.u32 920167782, %v343
        %v356 = vor.u32 %v354, %v355
        %v357 = vshll.u32 920167782, %v342
        %v358 = vshrl.u32 1326507024, %v343
        %v359 = vor.u32 %v357, %v358
        %vm360 = vcmp.lt.s32.totalorder %v341, 1
        %vm361 = vcmp.lt.s32.totalorder %v341, 2
        %vm362 = vcmp.lt.s32.totalorder %v341, 3
        %vm363 = vcmp.lt.s32.totalorder %v341, 4
        %v364 = vsel %vm360, %v344, %v347
        %v365 = vsel %vm363, %v353, 2102212464
        %v366 = vsel %vm362, %v350, %v365
        %v367 = vsel %vm361, %v364, %v366
        %v368 = vsel %vm360, %v347, %v350
        %v369 = vsel %vm363, %v356, 920167782
        %v370 = vsel %vm362, %v353, %v369
        %v371 = vsel %vm361, %v368, %v370
        %v372 = vsel %vm360, %v350, %v353
        %v373 = vsel %vm363, %v359, 1326507024
        %v374 = vsel %vm362, %v356, %v373
        %v375 = vsel %vm361, %v372, %v374
        %v376 = vshll.u32 %v336, 8
        %v377 = vand.u32 %v376, 65535
        %v378 = vshrl.u32 %v376, 16
        %v379 = vand.u32 %v375, 65535
        %v380 = vshrl.u32 %v375, 16
        %v381 = vmul.u32 %v377, %v379
        %v382 = vmul.u32 %v377, %v380
        %v383 = vmul.u32 %v378, %v379
        %v384 = vmul.u32 %v378, %v380
        %v385 = vshll.u32 %v382, 16
        %v386 = vshrl.u32 %v382, 16
        %v387 = vshll.u32 %v383, 16
        %v388 = vshrl.u32 %v383, 16
        %vm389 = vc.u32 %v381, %v385
        %v390 = vsel %vm389, 1, 0
        %v391 = vadd.s32 %v381, %v385
        %v392 = vadd.s32 %v384, %v390
        %vm393 = vc.u32 %v391, %v387
        %v394 = vsel %vm393, 1, 0
        %v395 = vadd.s32 %v391, %v387
        %v396 = vadd.s32 %v392, %v394
        %v397 = vadd.s32 %v396, %v386
        %v398 = vadd.s32 %v397, %v388
        %v399 = vand.u32 %v376, 65535
        %v400 = vshrl.u32 %v376, 16
        %v401 = vand.u32 %v371, 65535
        %v402 = vshrl.u32 %v371, 16
        %v403 = vmul.u32 %v399, %v401
        %v404 = vmul.u32 %v399, %v402
        %v405 = vmul.u32 %v400, %v401
        %v406 = vmul.u32 %v400, %v402
        %v407 = vshll.u32 %v404, 16
        %v408 = vshrl.u32 %v404, 16
        %v409 = vshll.u32 %v405, 16
        %v410 = vshrl.u32 %v405, 16
        %vm411 = vc.u32 %v403, %v407
        %v412 = vsel %vm411, 1, 0
        %v413 = vadd.s32 %v403, %v407
        %v414 = vadd.s32 %v406, %v412
        %vm415 = vc.u32 %v413, %v409
        %v416 = vsel %vm415, 1, 0
        %v417 = vadd.s32 %v413, %v409
        %v418 = vadd.s32 %v414, %v416
        %v419 = vadd.s32 %v418, %v408
        %v420 = vadd.s32 %v419, %v410
        %v421 = vmul.u32 %v376, %v367
        %v422 = vadd.s32 %v398, %v417
        %vm423 = vc.u32 %v398, %v417
        %v424 = vadd.s32 %v420, 1
        %v425 = vsel %vm423, %v424, %v420
        %v426 = vadd.s32 %v421, %v425
        %v427 = vadd.s32 %v426, 536870912
        %v428 = vshrl.u32 %v427, 30
        %v429 = vshll.u32 %v428, 30
        %v430 = vsub.s32 %v426, %v429
        %vm431 = vcmp.lt.s32.totalorder %v430, 0
        %v432 = vsub.s32 0, %v430
        %v433 = vsel %vm431, %v432, %v430
        %v434 = vclz %v433
        %v435 = vsub.s32 %v434, 2
        %vm436 = vcmp.gt.s32.totalorder 0, %v435
        %v437 = vsel %vm436, 0, %v435
        %v438 = vsub.s32 32, %v437
        %v439 = vshll.u32 %v430, %v437
        %v440 = vshrl.u32 %v422, %v438
        %v441 = vor.u32 %v439, %v440
        %v442 = vsub.s32 4294967266, %v437
        %v443 = vadd.s32 %v442, 127
        %v444 = vshll.u32 %v443, 23
        %v445 = vor.u32 4788187, %v444
        %v446 = vand.u32 2147483647, %v445
        %v448 = vcvt.s32.f32 %v441
        %v449 = vmul.f32 %v448, %v446
        %v450 = vxor.u32 %v449, 2147483648
        %v451 = vsel %vm330, %v450, %v449
        %v452 = vsub.s32 4, %v428
        %v453 = vsel %vm330, %v452, %v428
        %v454 = vsel %vm329, %v320, %v451
        %v455 = vsel %vm329, 0, %v453
        %v456 = vmul.f32 %v454, %v454
        %v457 = vmul.f32 %v456, -0.001358992
        %v458 = vadd.f32 %v457, 0.041655596
        %v459 = vmul.f32 %v456, %v458
        %v460 = vadd.f32 %v459, -0.4999988
        %v461 = vmul.f32 %v456, %v460
        %v462 = vadd.f32 1.0, %v461
        %v463 = vmul.f32 %v454, %v454
        %v464 = vmul.f32 %v463, -0.00019511016
        %v465 = vadd.f32 %v464, 0.008332121
        %v466 = vmul.f32 %v463, %v465
        %v467 = vadd.f32 %v466, -0.16666654
        %v468 = vmul.f32 %v463, %v467
        %v469 = vadd.f32 %v468, 1.0
        %v470 = vmul.f32 %v469, %v454
        %vm471 = vweird.f32 %v320
        %v472 = vadd.s32 %v455, 3
        %v473 = vand.u32 %v472, 3
        %vm474 = vcmp.lt.s32.totalorder %v473, 2
        %vm475 = vcmp.eq.s32.totalorder %v473, 0
        %v476 = vxor.u32 %v470, 2147483648
        %v477 = vsel %vm475, %v462, %v476
        %vm478 = vcmp.eq.s32.totalorder %v473, 2
        %v479 = vxor.u32 %v462, 2147483648
        %v480 = vsel %vm478, %v479, %v470
        %v481 = vsel %vm474, %v477, %v480
        %v482 = vsel %vm471, nan, %v481
        %v483 = vand.u32 2147483647, %v321
        %vm484 = vcmp.le.f32.partialorder %v483, 0.7853982
        %vm485 = vcmp.lt.s32.totalorder %v321, 0
        %v486 = vand.u32 %v321, 2139095040
        %v487 = vshrl.u32 %v486, 23
        %v488 = vsub.s32 %v487, 127
        %v489 = vand.u32 2147483647, %v321
        %v490 = vand.u32 %v489, 8388607
        %v491 = vor.u32 %v490, 8388608
        %v492 = vsub.s32 0, %v491
        %v493 = vadd.s32 %v488, 1
        %vm494 = vcmp.gt.s32.totalorder %v493, 0
        %v495 = vsel %vm494, %v493, 0
        %v496 = vshrl.u32 %v495, 5
        %v497 = vand.u32 %v495, 31
        %v498 = vsub.s32 32, %v497
        %v499 = vshrl.u32 683565275, %v498
        %v500 = vshll.u32 683565275, %v497
        %v501 = vshrl.u32 2475754826, %v498
        %v502 = vor.u32 %v500, %v501
        %v503 = vshll.u32 2475754826, %v497
        %v504 = vshrl.u32 2131351028, %v498
        %v505 = vor.u32 %v503, %v504
        %v506 = vshll.u32 2131351028, %v497
        %v507 = vshrl.u32 2102212464, %v498
        %v508 = vor.u32 %v506, %v507
        %v509 = vshll.u32 2102212464, %v497
        %v510 = vshrl.u32 920167782, %v498
        %v511 = vor.u32 %v509, %v510
        %v512 = vshll.u32 920167782, %v497
        %v513 = vshrl.u32 1326507024, %v498
        %v514 = vor.u32 %v512, %v513
        %vm515 = vcmp.lt.s32.totalorder %v496, 1
        %vm516 = vcmp.lt.s32.totalorder %v496, 2
        %vm517 = vcmp.lt.s32.totalorder %v496, 3
        %vm518 = vcmp.lt.s32.totalorder %v496, 4
        %v519 = vsel %vm515, %v499, %v502
        %v520 = vsel %vm518, %v508, 2102212464
        %v521 = vsel %vm517, %v505, %v520
        %v522 = vsel %vm516, %v519, %v521
        %v523 = vsel %vm515, %v502, %v505
        %v524 = vsel %vm518, %v511, 920167782
        %v525 = vsel %vm517, %v508, %v524
        %v526 = vsel %vm516, %v523, %v525
        %v527 = vsel %vm515, %v505, %v508
        %v528 = vsel %vm518, %v514, 1326507024
        %v529 = vsel %vm517, %v511, %v528
        %v530 = vsel %vm516, %v527, %v529
        %v531 = vshll.u32 %v491, 8
        %v532 = vand.u32 %v531, 65535
        %v533 = vshrl.u32 %v531, 16
        %v534 = vand.u32 %v530, 65535
        %v535 = vshrl.u32 %v530, 16
        %v536 = vmul.u32 %v532, %v534
        %v537 = vmul.u32 %v532, %v535
        %v538 = vmul.u32 %v533, %v534
        %v539 = vmul.u32 %v533, %v535
        %v540 = vshll.u32 %v537, 16
        %v541 = vshrl.u32 %v537, 16
        %v542 = vshll.u32 %v538, 16
        %v543 = vshrl.u32 %v538, 16
        %vm544 = vc.u32 %v536, %v540
        %v545 = vsel %vm544, 1, 0
        %v546 = vadd.s32 %v536, %v540
        %v547 = vadd.s32 %v539, %v545
        %vm548 = vc.u32 %v546, %v542
        %v549 = vsel %vm548, 1, 0
        %v550 = vadd.s32 %v546, %v542
        %v551 = vadd.s32 %v547, %v549
        %v552 = vadd.s32 %v551, %v541
        %v553 = vadd.s32 %v552, %v543
        %v554 = vand.u32 %v531, 65535
        %v555 = vshrl.u32 %v531, 16
        %v556 = vand.u32 %v526, 65535
        %v557 = vshrl.u32 %v526, 16
        %v558 = vmul.u32 %v554, %v556
        %v559 = vmul.u32 %v554, %v557
        %v560 = vmul.u32 %v555, %v556
        %v561 = vmul.u32 %v555, %v557
        %v562 = vshll.u32 %v559, 16
        %v563 = vshrl.u32 %v559, 16
        %v564 = vshll.u32 %v560, 16
        %v565 = vshrl.u32 %v560, 16
        %vm566 = vc.u32 %v558, %v562
        %v567 = vsel %vm566, 1, 0
        %v568 = vadd.s32 %v558, %v562
        %v569 = vadd.s32 %v561, %v567
        %vm570 = vc.u32 %v568, %v564
        %v571 = vsel %vm570, 1, 0
        %v572 = vadd.s32 %v568, %v564
        %v573 = vadd.s32 %v569, %v571
        %v574 = vadd.s32 %v573, %v563
        %v575 = vadd.s32 %v574, %v565
        %v576 = vmul.u32 %v531, %v522
        %v577 = vadd.s32 %v553, %v572
        %vm578 = vc.u32 %v553, %v572
        %v579 = vadd.s32 %v575, 1
        %v580 = vsel %vm578, %v579, %v575
        %v581 = vadd.s32 %v576, %v580
        %v582 = vadd.s32 %v581, 536870912
        %v583 = vshrl.u32 %v582, 30
        %v584 = vshll.u32 %v583, 30
        %v585 = vsub.s32 %v581, %v584
        %vm586 = vcmp.lt.s32.totalorder %v585, 0
        %v587 = vsub.s32 0, %v585
        %v588 = vsel %vm586, %v587, %v585
        %v589 = vclz %v588
        %v590 = vsub.s32 %v589, 2
        %vm591 = vcmp.gt.s32.totalorder 0, %v590
        %v592 = vsel %vm591, 0, %v590
        %v593 = vsub.s32 32, %v592
        %v594 = vshll.u32 %v585, %v592
        %v595 = vshrl.u32 %v577, %v593
        %v596 = vor.u32 %v594, %v595
        %v597 = vsub.s32 4294967266, %v592
        %v598 = vadd.s32 %v597, 127
        %v599 = vshll.u32 %v598, 23
        %v600 = vor.u32 4788187, %v599
        %v601 = vand.u32 2147483647, %v600
        %v603 = vcvt.s32.f32 %v596
        %v604 = vmul.f32 %v603, %v601
        %v605 = vxor.u32 %v604, 2147483648
        %v606 = vsel %vm485, %v605, %v604
        %v607 = vsub.s32 4, %v583
        %v608 = vsel %vm485, %v607, %v583
        %v609 = vsel %vm484, %v321, %v606
        %v610 = vsel %vm484, 0, %v608
        %v611 = vmul.f32 %v609, %v609
        %v612 = vmul.f32 %v611, -0.001358992
        %v613 = vadd.f32 %v612, 0.041655596
        %v614 = vmul.f32 %v611, %v613
        %v615 = vadd.f32 %v614, -0.4999988
        %v616 = vmul.f32 %v611, %v615
        %v617 = vadd.f32 1.0, %v616
        %v618 = vmul.f32 %v609, %v609
        %v619 = vmul.f32 %v618, -0.00019511016
        %v620 = vadd.f32 %v619, 0.008332121
        %v621 = vmul.f32 %v618, %v620
        %v622 = vadd.f32 %v621, -0.16666654
        %v623 = vmul.f32 %v618, %v622
        %v624 = vadd.f32 %v623, 1.0
        %v625 = vmul.f32 %v624, %v609
        %vm626 = vweird.f32 %v321
        %v627 = vadd.s32 %v610, 3
        %v628 = vand.u32 %v627, 3
        %vm629 = vcmp.lt.s32.totalorder %v628, 2
        %vm630 = vcmp.eq.s32.totalorder %v628, 0
        %v631 = vxor.u32 %v625, 2147483648
        %v632 = vsel %vm630, %v617, %v631
        %vm633 = vcmp.eq.s32.totalorder %v628, 2
        %v634 = vxor.u32 %v617, 2147483648
        %v635 = vsel %vm633, %v634, %v625
        %v636 = vsel %vm629, %v632, %v635
        %v637 = vsel %vm626, nan, %v636
        %v638 = vand.u32 2147483647, %v322
        %vm639 = vcmp.le.f32.partialorder %v638, 0.7853982
        %vm640 = vcmp.lt.s32.totalorder %v322, 0
        %v641 = vand.u32 %v322, 2139095040
        %v642 = vshrl.u32 %v641, 23
        %v643 = vsub.s32 %v642, 127
        %v644 = vand.u32 2147483647, %v322
        %v645 = vand.u32 %v644, 8388607
        %v646 = vor.u32 %v645, 8388608
        %v647 = vsub.s32 0, %v646
        %v648 = vadd.s32 %v643, 1
        %vm649 = vcmp.gt.s32.totalorder %v648, 0
        %v650 = vsel %vm649, %v648, 0
        %v651 = vshrl.u32 %v650, 5
        %v652 = vand.u32 %v650, 31
        %v653 = vsub.s32 32, %v652
        %v654 = vshrl.u32 683565275, %v653
        %v655 = vshll.u32 683565275, %v652
        %v656 = vshrl.u32 2475754826, %v653
        %v657 = vor.u32 %v655, %v656
        %v658 = vshll.u32 2475754826, %v652
        %v659 = vshrl.u32 2131351028, %v653
        %v660 = vor.u32 %v658, %v659
        %v661 = vshll.u32 2131351028, %v652
        %v662 = vshrl.u32 2102212464, %v653
        %v663 = vor.u32 %v661, %v662
        %v664 = vshll.u32 2102212464, %v652
        %v665 = vshrl.u32 920167782, %v653
        %v666 = vor.u32 %v664, %v665
        %v667 = vshll.u32 920167782, %v652
        %v668 = vshrl.u32 1326507024, %v653
        %v669 = vor.u32 %v667, %v668
        %vm670 = vcmp.lt.s32.totalorder %v651, 1
        %vm671 = vcmp.lt.s32.totalorder %v651, 2
        %vm672 = vcmp.lt.s32.totalorder %v651, 3
        %vm673 = vcmp.lt.s32.totalorder %v651, 4
        %v674 = vsel %vm670, %v654, %v657
        %v675 = vsel %vm673, %v663, 2102212464
        %v676 = vsel %vm672, %v660, %v675
        %v677 = vsel %vm671, %v674, %v676
        %v678 = vsel %vm670, %v657, %v660
        %v679 = vsel %vm673, %v666, 920167782
        %v680 = vsel %vm672, %v663, %v679
        %v681 = vsel %vm671, %v678, %v680
        %v682 = vsel %vm670, %v660, %v663
        %v683 = vsel %vm673, %v669, 1326507024
        %v684 = vsel %vm672, %v666, %v683
        %v685 = vsel %vm671, %v682, %v684
        %v686 = vshll.u32 %v646, 8
        %v687 = vand.u32 %v686, 65535
        %v688 = vshrl.u32 %v686, 16
        %v689 = vand.u32 %v685, 65535
        %v690 = vshrl.u32 %v685, 16
        %v691 = vmul.u32 %v687, %v689
        %v692 = vmul.u32 %v687, %v690
        %v693 = vmul.u32 %v688, %v689
        %v694 = vmul.u32 %v688, %v690
        %v695 = vshll.u32 %v692, 16
        %v696 = vshrl.u32 %v692, 16
        %v697 = vshll.u32 %v693, 16
        %v698 = vshrl.u32 %v693, 16
        %vm699 = vc.u32 %v691, %v695
        %v700 = vsel %vm699, 1, 0
        %v701 = vadd.s32 %v691, %v695
        %v702 = vadd.s32 %v694, %v700
        %vm703 = vc.u32 %v701, %v697
        %v704 = vsel %vm703, 1, 0
        %v705 = vadd.s32 %v701, %v697
        %v706 = vadd.s32 %v702, %v704
        %v707 = vadd.s32 %v706, %v696
        %v708 = vadd.s32 %v707, %v698
        %v709 = vand.u32 %v686, 65535
        %v710 = vshrl.u32 %v686, 16
        %v711 = vand.u32 %v681, 65535
        %v712 = vshrl.u32 %v681, 16
        %v713 = vmul.u32 %v709, %v711
        %v714 = vmul.u32 %v709, %v712
        %v715 = vmul.u32 %v710, %v711
        %v716 = vmul.u32 %v710, %v712
        %v717 = vshll.u32 %v714, 16
        %v718 = vshrl.u32 %v714, 16
        %v719 = vshll.u32 %v715, 16
        %v720 = vshrl.u32 %v715, 16
        %vm721 = vc.u32 %v713, %v717
        %v722 = vsel %vm721, 1, 0
        %v723 = vadd.s32 %v713, %v717
        %v724 = vadd.s32 %v716, %v722
        %vm725 = vc.u32 %v723, %v719
        %v726 = vsel %vm725, 1, 0
        %v727 = vadd.s32 %v723, %v719
        %v728 = vadd.s32 %v724, %v726
        %v729 = vadd.s32 %v728, %v718
        %v730 = vadd.s32 %v729, %v720
        %v731 = vmul.u32 %v686, %v677
        %v732 = vadd.s32 %v708, %v727
        %vm733 = vc.u32 %v708, %v727
        %v734 = vadd.s32 %v730, 1
        %v735 = vsel %vm733, %v734, %v730
        %v736 = vadd.s32 %v731, %v735
        %v737 = vadd.s32 %v736, 536870912
        %v738 = vshrl.u32 %v737, 30
        %v739 = vshll.u32 %v738, 30
        %v740 = vsub.s32 %v736, %v739
        %vm741 = vcmp.lt.s32.totalorder %v740, 0
        %v742 = vsub.s32 0, %v740
        %v743 = vsel %vm741, %v742, %v740
        %v744 = vclz %v743
        %v745 = vsub.s32 %v744, 2
        %vm746 = vcmp.gt.s32.totalorder 0, %v745
        %v747 = vsel %vm746, 0, %v745
        %v748 = vsub.s32 32, %v747
        %v749 = vshll.u32 %v740, %v747
        %v750 = vshrl.u32 %v732, %v748
        %v751 = vor.u32 %v749, %v750
        %v752 = vsub.s32 4294967266, %v747
        %v753 = vadd.s32 %v752, 127
        %v754 = vshll.u32 %v753, 23
        %v755 = vor.u32 4788187, %v754
        %v756 = vand.u32 2147483647, %v755
        %v758 = vcvt.s32.f32 %v751
        %v759 = vmul.f32 %v758, %v756
        %v760 = vxor.u32 %v759, 2147483648
        %v761 = vsel %vm640, %v760, %v759
        %v762 = vsub.s32 4, %v738
        %v763 = vsel %vm640, %v762, %v738
        %v764 = vsel %vm639, %v322, %v761
        %v765 = vsel %vm639, 0, %v763
        %v766 = vmul.f32 %v764, %v764
        %v767 = vmul.f32 %v766, -0.001358992
        %v768 = vadd.f32 %v767, 0.041655596
        %v769 = vmul.f32 %v766, %v768
        %v770 = vadd.f32 %v769, -0.4999988
        %v771 = vmul.f32 %v766, %v770
        %v772 = vadd.f32 1.0, %v771
        %v773 = vmul.f32 %v764, %v764
        %v774 = vmul.f32 %v773, -0.00019511016
        %v775 = vadd.f32 %v774, 0.008332121
        %v776 = vmul.f32 %v773, %v775
        %v777 = vadd.f32 %v776, -0.16666654
        %v778 = vmul.f32 %v773, %v777
        %v779 = vadd.f32 %v778, 1.0
        %v780 = vmul.f32 %v779, %v764
        %vm781 = vweird.f32 %v322
        %v782 = vadd.s32 %v765, 3
        %v783 = vand.u32 %v782, 3
        %vm784 = vcmp.lt.s32.totalorder %v783, 2
        %vm785 = vcmp.eq.s32.totalorder %v783, 0
        %v786 = vxor.u32 %v780, 2147483648
        %v787 = vsel %vm785, %v772, %v786
        %vm788 = vcmp.eq.s32.totalorder %v783, 2
        %v789 = vxor.u32 %v772, 2147483648
        %v790 = vsel %vm788, %v789, %v780
        %v791 = vsel %vm784, %v787, %v790
        %v792 = vsel %vm781, nan, %v791
        %v793 = vand.u32 2147483647, %v323
        %vm794 = vcmp.le.f32.partialorder %v793, 0.7853982
        %vm795 = vcmp.lt.s32.totalorder %v323, 0
        %v796 = vand.u32 %v323, 2139095040
        %v797 = vshrl.u32 %v796, 23
        %v798 = vsub.s32 %v797, 127
        %v799 = vand.u32 2147483647, %v323
        %v800 = vand.u32 %v799, 8388607
        %v801 = vor.u32 %v800, 8388608
        %v802 = vsub.s32 0, %v801
        %v803 = vadd.s32 %v798, 1
        %vm804 = vcmp.gt.s32.totalorder %v803, 0
        %v805 = vsel %vm804, %v803, 0
        %v806 = vshrl.u32 %v805, 5
        %v807 = vand.u32 %v805, 31
        %v808 = vsub.s32 32, %v807
        %v809 = vshrl.u32 683565275, %v808
        %v810 = vshll.u32 683565275, %v807
        %v811 = vshrl.u32 2475754826, %v808
        %v812 = vor.u32 %v810, %v811
        %v813 = vshll.u32 2475754826, %v807
        %v814 = vshrl.u32 2131351028, %v808
        %v815 = vor.u32 %v813, %v814
        %v816 = vshll.u32 2131351028, %v807
        %v817 = vshrl.u32 2102212464, %v808
        %v818 = vor.u32 %v816, %v817
        %v819 = vshll.u32 2102212464, %v807
        %v820 = vshrl.u32 920167782, %v808
        %v821 = vor.u32 %v819, %v820
        %v822 = vshll.u32 920167782, %v807
        %v823 = vshrl.u32 1326507024, %v808
        %v824 = vor.u32 %v822, %v823
        %vm825 = vcmp.lt.s32.totalorder %v806, 1
        %vm826 = vcmp.lt.s32.totalorder %v806, 2
        %vm827 = vcmp.lt.s32.totalorder %v806, 3
        %vm828 = vcmp.lt.s32.totalorder %v806, 4
        %v829 = vsel %vm825, %v809, %v812
        %v830 = vsel %vm828, %v818, 2102212464
        %v831 = vsel %vm827, %v815, %v830
        %v832 = vsel %vm826, %v829, %v831
        %v833 = vsel %vm825, %v812, %v815
        %v834 = vsel %vm828, %v821, 920167782
        %v835 = vsel %vm827, %v818, %v834
        %v836 = vsel %vm826, %v833, %v835
        %v837 = vsel %vm825, %v815, %v818
        %v838 = vsel %vm828, %v824, 1326507024
        %v839 = vsel %vm827, %v821, %v838
        %v840 = vsel %vm826, %v837, %v839
        %v841 = vshll.u32 %v801, 8
        %v842 = vand.u32 %v841, 65535
        %v843 = vshrl.u32 %v841, 16
        %v844 = vand.u32 %v840, 65535
        %v845 = vshrl.u32 %v840, 16
        %v846 = vmul.u32 %v842, %v844
        %v847 = vmul.u32 %v842, %v845
        %v848 = vmul.u32 %v843, %v844
        %v849 = vmul.u32 %v843, %v845
        %v850 = vshll.u32 %v847, 16
        %v851 = vshrl.u32 %v847, 16
        %v852 = vshll.u32 %v848, 16
        %v853 = vshrl.u32 %v848, 16
        %vm854 = vc.u32 %v846, %v850
        %v855 = vsel %vm854, 1, 0
        %v856 = vadd.s32 %v846, %v850
        %v857 = vadd.s32 %v849, %v855
        %vm858 = vc.u32 %v856, %v852
        %v859 = vsel %vm858, 1, 0
        %v860 = vadd.s32 %v856, %v852
        %v861 = vadd.s32 %v857, %v859
        %v862 = vadd.s32 %v861, %v851
        %v863 = vadd.s32 %v862, %v853
        %v864 = vand.u32 %v841, 65535
        %v865 = vshrl.u32 %v841, 16
        %v866 = vand.u32 %v836, 65535
        %v867 = vshrl.u32 %v836, 16
        %v868 = vmul.u32 %v864, %v866
        %v869 = vmul.u32 %v864, %v867
        %v870 = vmul.u32 %v865, %v866
        %v871 = vmul.u32 %v865, %v867
        %v872 = vshll.u32 %v869, 16
        %v873 = vshrl.u32 %v869, 16
        %v874 = vshll.u32 %v870, 16
        %v875 = vshrl.u32 %v870, 16
        %vm876 = vc.u32 %v868, %v872
        %v877 = vsel %vm876, 1, 0
        %v878 = vadd.s32 %v868, %v872
        %v879 = vadd.s32 %v871, %v877
        %vm880 = vc.u32 %v878, %v874
        %v881 = vsel %vm880, 1, 0
        %v882 = vadd.s32 %v878, %v874
        %v883 = vadd.s32 %v879, %v881
        %v884 = vadd.s32 %v883, %v873
        %v885 = vadd.s32 %v884, %v875
        %v886 = vmul.u32 %v841, %v832
        %v887 = vadd.s32 %v863, %v882
        %vm888 = vc.u32 %v863, %v882
        %v889 = vadd.s32 %v885, 1
        %v890 = vsel %vm888, %v889, %v885
        %v891 = vadd.s32 %v886, %v890
        %v892 = vadd.s32 %v891, 536870912
        %v893 = vshrl.u32 %v892, 30
        %v894 = vshll.u32 %v893, 30
        %v895 = vsub.s32 %v891, %v894
        %vm896 = vcmp.lt.s32.totalorder %v895, 0
        %v897 = vsub.s32 0, %v895
        %v898 = vsel %vm896, %v897, %v895
        %v899 = vclz %v898
        %v900 = vsub.s32 %v899, 2
        %vm901 = vcmp.gt.s32.totalorder 0, %v900
        %v902 = vsel %vm901, 0, %v900
        %v903 = vsub.s32 32, %v902
        %v904 = vshll.u32 %v895, %v902
        %v905 = vshrl.u32 %v887, %v903
        %v906 = vor.u32 %v904, %v905
        %v907 = vsub.s32 4294967266, %v902
        %v908 = vadd.s32 %v907, 127
        %v909 = vshll.u32 %v908, 23
        %v910 = vor.u32 4788187, %v909
        %v911 = vand.u32 2147483647, %v910
        %v913 = vcvt.s32.f32 %v906
        %v914 = vmul.f32 %v913, %v911
        %v915 = vxor.u32 %v914, 2147483648
        %v916 = vsel %vm795, %v915, %v914
        %v917 = vsub.s32 4, %v893
        %v918 = vsel %vm795, %v917, %v893
        %v919 = vsel %vm794, %v323, %v916
        %v920 = vsel %vm794, 0, %v918
        %v921 = vmul.f32 %v919, %v919
        %v922 = vmul.f32 %v921, -0.001358992
        %v923 = vadd.f32 %v922, 0.041655596
        %v924 = vmul.f32 %v921, %v923
        %v925 = vadd.f32 %v924, -0.4999988
        %v926 = vmul.f32 %v921, %v925
        %v927 = vadd.f32 1.0, %v926
        %v928 = vmul.f32 %v919, %v919
        %v929 = vmul.f32 %v928, -0.00019511016
        %v930 = vadd.f32 %v929, 0.008332121
        %v931 = vmul.f32 %v928, %v930
        %v932 = vadd.f32 %v931, -0.16666654
        %v933 = vmul.f32 %v928, %v932
        %v934 = vadd.f32 %v933, 1.0
        %v935 = vmul.f32 %v934, %v919
        %vm936 = vweird.f32 %v323
        %v937 = vadd.s32 %v920, 3
        %v938 = vand.u32 %v937, 3
        %vm939 = vcmp.lt.s32.totalorder %v938, 2
        %vm940 = vcmp.eq.s32.totalorder %v938, 0
        %v941 = vxor.u32 %v935, 2147483648
        %v942 = vsel %vm940, %v927, %v941
        %vm943 = vcmp.eq.s32.totalorder %v938, 2
        %v944 = vxor.u32 %v927, 2147483648
        %v945 = vsel %vm943, %v944, %v935
        %v946 = vsel %vm939, %v942, %v945
        %v947 = vsel %vm936, nan, %v946
        %v948 = vand.u32 2147483647, %v324
        %vm949 = vcmp.le.f32.partialorder %v948, 0.7853982
        %vm950 = vcmp.lt.s32.totalorder %v324, 0
        %v951 = vand.u32 %v324, 2139095040
        %v952 = vshrl.u32 %v951, 23
        %v953 = vsub.s32 %v952, 127
        %v954 = vand.u32 2147483647, %v324
        %v955 = vand.u32 %v954, 8388607
        %v956 = vor.u32 %v955, 8388608
        %v957 = vsub.s32 0, %v956
        %v958 = vadd.s32 %v953, 1
        %vm959 = vcmp.gt.s32.totalorder %v958, 0
        %v960 = vsel %vm959, %v958, 0
        %v961 = vshrl.u32 %v960, 5
        %v962 = vand.u32 %v960, 31
        %v963 = vsub.s32 32, %v962
        %v964 = vshrl.u32 683565275, %v963
        %v965 = vshll.u32 683565275, %v962
        %v966 = vshrl.u32 2475754826, %v963
        %v967 = vor.u32 %v965, %v966
        %v968 = vshll.u32 2475754826, %v962
        %v969 = vshrl.u32 2131351028, %v963
        %v970 = vor.u32 %v968, %v969
        %v971 = vshll.u32 2131351028, %v962
        %v972 = vshrl.u32 2102212464, %v963
        %v973 = vor.u32 %v971, %v972
        %v974 = vshll.u32 2102212464, %v962
        %v975 = vshrl.u32 920167782, %v963
        %v976 = vor.u32 %v974, %v975
        %v977 = vshll.u32 920167782, %v962
        %v978 = vshrl.u32 1326507024, %v963
        %v979 = vor.u32 %v977, %v978
        %vm980 = vcmp.lt.s32.totalorder %v961, 1
        %vm981 = vcmp.lt.s32.totalorder %v961, 2
        %vm982 = vcmp.lt.s32.totalorder %v961, 3
        %vm983 = vcmp.lt.s32.totalorder %v961, 4
        %v984 = vsel %vm980, %v964, %v967
        %v985 = vsel %vm983, %v973, 2102212464
        %v986 = vsel %vm982, %v970, %v985
        %v987 = vsel %vm981, %v984, %v986
        %v988 = vsel %vm980, %v967, %v970
        %v989 = vsel %vm983, %v976, 920167782
        %v990 = vsel %vm982, %v973, %v989
        %v991 = vsel %vm981, %v988, %v990
        %v992 = vsel %vm980, %v970, %v973
        %v993 = vsel %vm983, %v979, 1326507024
        %v994 = vsel %vm982, %v976, %v993
        %v995 = vsel %vm981, %v992, %v994
        %v996 = vshll.u32 %v956, 8
        %v997 = vand.u32 %v996, 65535
        %v998 = vshrl.u32 %v996, 16
        %v999 = vand.u32 %v995, 65535
        %v1000 = vshrl.u32 %v995, 16
        %v1001 = vmul.u32 %v997, %v999
        %v1002 = vmul.u32 %v997, %v1000
        %v1003 = vmul.u32 %v998, %v999
        %v1004 = vmul.u32 %v998, %v1000
        %v1005 = vshll.u32 %v1002, 16
        %v1006 = vshrl.u32 %v1002, 16
        %v1007 = vshll.u32 %v1003, 16
        %v1008 = vshrl.u32 %v1003, 16
        %vm1009 = vc.u32 %v1001, %v1005
        %v1010 = vsel %vm1009, 1, 0
        %v1011 = vadd.s32 %v1001, %v1005
        %v1012 = vadd.s32 %v1004, %v1010
        %vm1013 = vc.u32 %v1011, %v1007
        %v1014 = vsel %vm1013, 1, 0
        %v1015 = vadd.s32 %v1011, %v1007
        %v1016 = vadd.s32 %v1012, %v1014
        %v1017 = vadd.s32 %v1016, %v1006
        %v1018 = vadd.s32 %v1017, %v1008
        %v1019 = vand.u32 %v996, 65535
        %v1020 = vshrl.u32 %v996, 16
        %v1021 = vand.u32 %v991, 65535
        %v1022 = vshrl.u32 %v991, 16
        %v1023 = vmul.u32 %v1019, %v1021
        %v1024 = vmul.u32 %v1019, %v1022
        %v1025 = vmul.u32 %v1020, %v1021
        %v1026 = vmul.u32 %v1020, %v1022
        %v1027 = vshll.u32 %v1024, 16
        %v1028 = vshrl.u32 %v1024, 16
        %v1029 = vshll.u32 %v1025, 16
        %v1030 = vshrl.u32 %v1025, 16
        %vm1031 = vc.u32 %v1023, %v1027
        %v1032 = vsel %vm1031, 1, 0
        %v1033 = vadd.s32 %v1023, %v1027
        %v1034 = vadd.s32 %v1026, %v1032
        %vm1035 = vc.u32 %v1033, %v1029
        %v1036 = vsel %vm1035, 1, 0
        %v1037 = vadd.s32 %v1033, %v1029
        %v1038 = vadd.s32 %v1034, %v1036
        %v1039 = vadd.s32 %v1038, %v1028
        %v1040 = vadd.s32 %v1039, %v1030
        %v1041 = vmul.u32 %v996, %v987
        %v1042 = vadd.s32 %v1018, %v1037
        %vm1043 = vc.u32 %v1018, %v1037
        %v1044 = vadd.s32 %v1040, 1
        %v1045 = vsel %vm1043, %v1044, %v1040
        %v1046 = vadd.s32 %v1041, %v1045
        %v1047 = vadd.s32 %v1046, 536870912
        %v1048 = vshrl.u32 %v1047, 30
        %v1049 = vshll.u32 %v1048, 30
        %v1050 = vsub.s32 %v1046, %v1049
        %vm1051 = vcmp.lt.s32.totalorder %v1050, 0
        %v1052 = vsub.s32 0, %v1050
        %v1053 = vsel %vm1051, %v1052, %v1050
        %v1054 = vclz %v1053
        %v1055 = vsub.s32 %v1054, 2
        %vm1056 = vcmp.gt.s32.totalorder 0, %v1055
        %v1057 = vsel %vm1056, 0, %v1055
        %v1058 = vsub.s32 32, %v1057
        %v1059 = vshll.u32 %v1050, %v1057
        %v1060 = vshrl.u32 %v1042, %v1058
        %v1061 = vor.u32 %v1059, %v1060
        %v1062 = vsub.s32 4294967266, %v1057
        %v1063 = vadd.s32 %v1062, 127
        %v1064 = vshll.u32 %v1063, 23
        %v1065 = vor.u32 4788187, %v1064
        %v1066 = vand.u32 2147483647, %v1065
        %v1068 = vcvt.s32.f32 %v1061
        %v1069 = vmul.f32 %v1068, %v1066
        %v1070 = vxor.u32 %v1069, 2147483648
        %v1071 = vsel %vm950, %v1070, %v1069
        %v1072 = vsub.s32 4, %v1048
        %v1073 = vsel %vm950, %v1072, %v1048
        %v1074 = vsel %vm949, %v324, %v1071
        %v1075 = vsel %vm949, 0, %v1073
        %v1076 = vmul.f32 %v1074, %v1074
        %v1077 = vmul.f32 %v1076, -0.001358992
        %v1078 = vadd.f32 %v1077, 0.041655596
        %v1079 = vmul.f32 %v1076, %v1078
        %v1080 = vadd.f32 %v1079, -0.4999988
        %v1081 = vmul.f32 %v1076, %v1080
        %v1082 = vadd.f32 1.0, %v1081
        %v1083 = vmul.f32 %v1074, %v1074
        %v1084 = vmul.f32 %v1083, -0.00019511016
        %v1085 = vadd.f32 %v1084, 0.008332121
        %v1086 = vmul.f32 %v1083, %v1085
        %v1087 = vadd.f32 %v1086, -0.16666654
        %v1088 = vmul.f32 %v1083, %v1087
        %v1089 = vadd.f32 %v1088, 1.0
        %v1090 = vmul.f32 %v1089, %v1074
        %vm1091 = vweird.f32 %v324
        %v1092 = vadd.s32 %v1075, 3
        %v1093 = vand.u32 %v1092, 3
        %vm1094 = vcmp.lt.s32.totalorder %v1093, 2
        %vm1095 = vcmp.eq.s32.totalorder %v1093, 0
        %v1096 = vxor.u32 %v1090, 2147483648
        %v1097 = vsel %vm1095, %v1082, %v1096
        %vm1098 = vcmp.eq.s32.totalorder %v1093, 2
        %v1099 = vxor.u32 %v1082, 2147483648
        %v1100 = vsel %vm1098, %v1099, %v1090
        %v1101 = vsel %vm1094, %v1097, %v1100
        %v1102 = vsel %vm1091, nan, %v1101
        %v1103 = vand.u32 2147483647, %v325
        %vm1104 = vcmp.le.f32.partialorder %v1103, 0.7853982
        %vm1105 = vcmp.lt.s32.totalorder %v325, 0
        %v1106 = vand.u32 %v325, 2139095040
        %v1107 = vshrl.u32 %v1106, 23
        %v1108 = vsub.s32 %v1107, 127
        %v1109 = vand.u32 2147483647, %v325
        %v1110 = vand.u32 %v1109, 8388607
        %v1111 = vor.u32 %v1110, 8388608
        %v1112 = vsub.s32 0, %v1111
        %v1113 = vadd.s32 %v1108, 1
        %vm1114 = vcmp.gt.s32.totalorder %v1113, 0
        %v1115 = vsel %vm1114, %v1113, 0
        %v1116 = vshrl.u32 %v1115, 5
        %v1117 = vand.u32 %v1115, 31
        %v1118 = vsub.s32 32, %v1117
        %v1119 = vshrl.u32 683565275, %v1118
        %v1120 = vshll.u32 683565275, %v1117
        %v1121 = vshrl.u32 2475754826, %v1118
        %v1122 = vor.u32 %v1120, %v1121
        %v1123 = vshll.u32 2475754826, %v1117
        %v1124 = vshrl.u32 2131351028, %v1118
        %v1125 = vor.u32 %v1123, %v1124
        %v1126 = vshll.u32 2131351028, %v1117
        %v1127 = vshrl.u32 2102212464, %v1118
        %v1128 = vor.u32 %v1126, %v1127
        %v1129 = vshll.u32 2102212464, %v1117
        %v1130 = vshrl.u32 920167782, %v1118
        %v1131 = vor.u32 %v1129, %v1130
        %v1132 = vshll.u32 920167782, %v1117
        %v1133 = vshrl.u32 1326507024, %v1118
        %v1134 = vor.u32 %v1132, %v1133
        %vm1135 = vcmp.lt.s32.totalorder %v1116, 1
        %vm1136 = vcmp.lt.s32.totalorder %v1116, 2
        %vm1137 = vcmp.lt.s32.totalorder %v1116, 3
        %vm1138 = vcmp.lt.s32.totalorder %v1116, 4
        %v1139 = vsel %vm1135, %v1119, %v1122
        %v1140 = vsel %vm1138, %v1128, 2102212464
        %v1141 = vsel %vm1137, %v1125, %v1140
        %v1142 = vsel %vm1136, %v1139, %v1141
        %v1143 = vsel %vm1135, %v1122, %v1125
        %v1144 = vsel %vm1138, %v1131, 920167782
        %v1145 = vsel %vm1137, %v1128, %v1144
        %v1146 = vsel %vm1136, %v1143, %v1145
        %v1147 = vsel %vm1135, %v1125, %v1128
        %v1148 = vsel %vm1138, %v1134, 1326507024
        %v1149 = vsel %vm1137, %v1131, %v1148
        %v1150 = vsel %vm1136, %v1147, %v1149
        %v1151 = vshll.u32 %v1111, 8
        %v1152 = vand.u32 %v1151, 65535
        %v1153 = vshrl.u32 %v1151, 16
        %v1154 = vand.u32 %v1150, 65535
        %v1155 = vshrl.u32 %v1150, 16
        %v1156 = vmul.u32 %v1152, %v1154
        %v1157 = vmul.u32 %v1152, %v1155
        %v1158 = vmul.u32 %v1153, %v1154
        %v1159 = vmul.u32 %v1153, %v1155
        %v1160 = vshll.u32 %v1157, 16
        %v1161 = vshrl.u32 %v1157, 16
        %v1162 = vshll.u32 %v1158, 16
        %v1163 = vshrl.u32 %v1158, 16
        %vm1164 = vc.u32 %v1156, %v1160
        %v1165 = vsel %vm1164, 1, 0
        %v1166 = vadd.s32 %v1156, %v1160
        %v1167 = vadd.s32 %v1159, %v1165
        %vm1168 = vc.u32 %v1166, %v1162
        %v1169 = vsel %vm1168, 1, 0
        %v1170 = vadd.s32 %v1166, %v1162
        %v1171 = vadd.s32 %v1167, %v1169
        %v1172 = vadd.s32 %v1171, %v1161
        %v1173 = vadd.s32 %v1172, %v1163
        %v1174 = vand.u32 %v1151, 65535
        %v1175 = vshrl.u32 %v1151, 16
        %v1176 = vand.u32 %v1146, 65535
        %v1177 = vshrl.u32 %v1146, 16
        %v1178 = vmul.u32 %v1174, %v1176
        %v1179 = vmul.u32 %v1174, %v1177
        %v1180 = vmul.u32 %v1175, %v1176
        %v1181 = vmul.u32 %v1175, %v1177
        %v1182 = vshll.u32 %v1179, 16
        %v1183 = vshrl.u32 %v1179, 16
        %v1184 = vshll.u32 %v1180, 16
        %v1185 = vshrl.u32 %v1180, 16
        %vm1186 = vc.u32 %v1178, %v1182
        %v1187 = vsel %vm1186, 1, 0
        %v1188 = vadd.s32 %v1178, %v1182
        %v1189 = vadd.s32 %v1181, %v1187
        %vm1190 = vc.u32 %v1188, %v1184
        %v1191 = vsel %vm1190, 1, 0
        %v1192 = vadd.s32 %v1188, %v1184
        %v1193 = vadd.s32 %v1189, %v1191
        %v1194 = vadd.s32 %v1193, %v1183
        %v1195 = vadd.s32 %v1194, %v1185
        %v1196 = vmul.u32 %v1151, %v1142
        %v1197 = vadd.s32 %v1173, %v1192
        %vm1198 = vc.u32 %v1173, %v1192
        %v1199 = vadd.s32 %v1195, 1
        %v1200 = vsel %vm1198, %v1199, %v1195
        %v1201 = vadd.s32 %v1196, %v1200
        %v1202 = vadd.s32 %v1201, 536870912
        %v1203 = vshrl.u32 %v1202, 30
        %v1204 = vshll.u32 %v1203, 30
        %v1205 = vsub.s32 %v1201, %v1204
        %vm1206 = vcmp.lt.s32.totalorder %v1205, 0
        %v1207 = vsub.s32 0, %v1205
        %v1208 = vsel %vm1206, %v1207, %v1205
        %v1209 = vclz %v1208
        %v1210 = vsub.s32 %v1209, 2
        %vm1211 = vcmp.gt.s32.totalorder 0, %v1210
        %v1212 = vsel %vm1211, 0, %v1210
        %v1213 = vsub.s32 32, %v1212
        %v1214 = vshll.u32 %v1205, %v1212
        %v1215 = vshrl.u32 %v1197, %v1213
        %v1216 = vor.u32 %v1214, %v1215
        %v1217 = vsub.s32 4294967266, %v1212
        %v1218 = vadd.s32 %v1217, 127
        %v1219 = vshll.u32 %v1218, 23
        %v1220 = vor.u32 4788187, %v1219
        %v1221 = vand.u32 2147483647, %v1220
        %v1223 = vcvt.s32.f32 %v1216
        %v1224 = vmul.f32 %v1223, %v1221
        %v1225 = vxor.u32 %v1224, 2147483648
        %v1226 = vsel %vm1105, %v1225, %v1224
        %v1227 = vsub.s32 4, %v1203
        %v1228 = vsel %vm1105, %v1227, %v1203
        %v1229 = vsel %vm1104, %v325, %v1226
        %v1230 = vsel %vm1104, 0, %v1228
        %v1231 = vmul.f32 %v1229, %v1229
        %v1232 = vmul.f32 %v1231, -0.001358992
        %v1233 = vadd.f32 %v1232, 0.041655596
        %v1234 = vmul.f32 %v1231, %v1233
        %v1235 = vadd.f32 %v1234, -0.4999988
        %v1236 = vmul.f32 %v1231, %v1235
        %v1237 = vadd.f32 1.0, %v1236
        %v1238 = vmul.f32 %v1229, %v1229
        %v1239 = vmul.f32 %v1238, -0.00019511016
        %v1240 = vadd.f32 %v1239, 0.008332121
        %v1241 = vmul.f32 %v1238, %v1240
        %v1242 = vadd.f32 %v1241, -0.16666654
        %v1243 = vmul.f32 %v1238, %v1242
        %v1244 = vadd.f32 %v1243, 1.0
        %v1245 = vmul.f32 %v1244, %v1229
        %vm1246 = vweird.f32 %v325
        %v1247 = vadd.s32 %v1230, 3
        %v1248 = vand.u32 %v1247, 3
        %vm1249 = vcmp.lt.s32.totalorder %v1248, 2
        %vm1250 = vcmp.eq.s32.totalorder %v1248, 0
        %v1251 = vxor.u32 %v1245, 2147483648
        %v1252 = vsel %vm1250, %v1237, %v1251
        %vm1253 = vcmp.eq.s32.totalorder %v1248, 2
        %v1254 = vxor.u32 %v1237, 2147483648
        %v1255 = vsel %vm1253, %v1254, %v1245
        %v1256 = vsel %vm1249, %v1252, %v1255
        %v1257 = vsel %vm1246, nan, %v1256
        %v1258 = vand.u32 2147483647, %v326
        %vm1259 = vcmp.le.f32.partialorder %v1258, 0.7853982
        %vm1260 = vcmp.lt.s32.totalorder %v326, 0
        %v1261 = vand.u32 %v326, 2139095040
        %v1262 = vshrl.u32 %v1261, 23
        %v1263 = vsub.s32 %v1262, 127
        %v1264 = vand.u32 2147483647, %v326
        %v1265 = vand.u32 %v1264, 8388607
        %v1266 = vor.u32 %v1265, 8388608
        %v1267 = vsub.s32 0, %v1266
        %v1268 = vadd.s32 %v1263, 1
        %vm1269 = vcmp.gt.s32.totalorder %v1268, 0
        %v1270 = vsel %vm1269, %v1268, 0
        %v1271 = vshrl.u32 %v1270, 5
        %v1272 = vand.u32 %v1270, 31
        %v1273 = vsub.s32 32, %v1272
        %v1274 = vshrl.u32 683565275, %v1273
        %v1275 = vshll.u32 683565275, %v1272
        %v1276 = vshrl.u32 2475754826, %v1273
        %v1277 = vor.u32 %v1275, %v1276
        %v1278 = vshll.u32 2475754826, %v1272
        %v1279 = vshrl.u32 2131351028, %v1273
        %v1280 = vor.u32 %v1278, %v1279
        %v1281 = vshll.u32 2131351028, %v1272
        %v1282 = vshrl.u32 2102212464, %v1273
        %v1283 = vor.u32 %v1281, %v1282
        %v1284 = vshll.u32 2102212464, %v1272
        %v1285 = vshrl.u32 920167782, %v1273
        %v1286 = vor.u32 %v1284, %v1285
        %v1287 = vshll.u32 920167782, %v1272
        %v1288 = vshrl.u32 1326507024, %v1273
        %v1289 = vor.u32 %v1287, %v1288
        %vm1290 = vcmp.lt.s32.totalorder %v1271, 1
        %vm1291 = vcmp.lt.s32.totalorder %v1271, 2
        %vm1292 = vcmp.lt.s32.totalorder %v1271, 3
        %vm1293 = vcmp.lt.s32.totalorder %v1271, 4
        %v1294 = vsel %vm1290, %v1274, %v1277
        %v1295 = vsel %vm1293, %v1283, 2102212464
        %v1296 = vsel %vm1292, %v1280, %v1295
        %v1297 = vsel %vm1291, %v1294, %v1296
        %v1298 = vsel %vm1290, %v1277, %v1280
        %v1299 = vsel %vm1293, %v1286, 920167782
        %v1300 = vsel %vm1292, %v1283, %v1299
        %v1301 = vsel %vm1291, %v1298, %v1300
        %v1302 = vsel %vm1290, %v1280, %v1283
        %v1303 = vsel %vm1293, %v1289, 1326507024
        %v1304 = vsel %vm1292, %v1286, %v1303
        %v1305 = vsel %vm1291, %v1302, %v1304
        %v1306 = vshll.u32 %v1266, 8
        %v1307 = vand.u32 %v1306, 65535
        %v1308 = vshrl.u32 %v1306, 16
        %v1309 = vand.u32 %v1305, 65535
        %v1310 = vshrl.u32 %v1305, 16
        %v1311 = vmul.u32 %v1307, %v1309
        %v1312 = vmul.u32 %v1307, %v1310
        %v1313 = vmul.u32 %v1308, %v1309
        %v1314 = vmul.u32 %v1308, %v1310
        %v1315 = vshll.u32 %v1312, 16
        %v1316 = vshrl.u32 %v1312, 16
        %v1317 = vshll.u32 %v1313, 16
        %v1318 = vshrl.u32 %v1313, 16
        %vm1319 = vc.u32 %v1311, %v1315
        %v1320 = vsel %vm1319, 1, 0
        %v1321 = vadd.s32 %v1311, %v1315
        %v1322 = vadd.s32 %v1314, %v1320
        %vm1323 = vc.u32 %v1321, %v1317
        %v1324 = vsel %vm1323, 1, 0
        %v1325 = vadd.s32 %v1321, %v1317
        %v1326 = vadd.s32 %v1322, %v1324
        %v1327 = vadd.s32 %v1326, %v1316
        %v1328 = vadd.s32 %v1327, %v1318
        %v1329 = vand.u32 %v1306, 65535
        %v1330 = vshrl.u32 %v1306, 16
        %v1331 = vand.u32 %v1301, 65535
        %v1332 = vshrl.u32 %v1301, 16
        %v1333 = vmul.u32 %v1329, %v1331
        %v1334 = vmul.u32 %v1329, %v1332
        %v1335 = vmul.u32 %v1330, %v1331
        %v1336 = vmul.u32 %v1330, %v1332
        %v1337 = vshll.u32 %v1334, 16
        %v1338 = vshrl.u32 %v1334, 16
        %v1339 = vshll.u32 %v1335, 16
        %v1340 = vshrl.u32 %v1335, 16
        %vm1341 = vc.u32 %v1333, %v1337
        %v1342 = vsel %vm1341, 1, 0
        %v1343 = vadd.s32 %v1333, %v1337
        %v1344 = vadd.s32 %v1336, %v1342
        %vm1345 = vc.u32 %v1343, %v1339
        %v1346 = vsel %vm1345, 1, 0
        %v1347 = vadd.s32 %v1343, %v1339
        %v1348 = vadd.s32 %v1344, %v1346
        %v1349 = vadd.s32 %v1348, %v1338
        %v1350 = vadd.s32 %v1349, %v1340
        %v1351 = vmul.u32 %v1306, %v1297
        %v1352 = vadd.s32 %v1328, %v1347
        %vm1353 = vc.u32 %v1328, %v1347
        %v1354 = vadd.s32 %v1350, 1
        %v1355 = vsel %vm1353, %v1354, %v1350
        %v1356 = vadd.s32 %v1351, %v1355
        %v1357 = vadd.s32 %v1356, 536870912
        %v1358 = vshrl.u32 %v1357, 30
        %v1359 = vshll.u32 %v1358, 30
        %v1360 = vsub.s32 %v1356, %v1359
        %vm1361 = vcmp.lt.s32.totalorder %v1360, 0
        %v1362 = vsub.s32 0, %v1360
        %v1363 = vsel %vm1361, %v1362, %v1360
        %v1364 = vclz %v1363
        %v1365 = vsub.s32 %v1364, 2
        %vm1366 = vcmp.gt.s32.totalorder 0, %v1365
        %v1367 = vsel %vm1366, 0, %v1365
        %v1368 = vsub.s32 32, %v1367
        %v1369 = vshll.u32 %v1360, %v1367
        %v1370 = vshrl.u32 %v1352, %v1368
        %v1371 = vor.u32 %v1369, %v1370
        %v1372 = vsub.s32 4294967266, %v1367
        %v1373 = vadd.s32 %v1372, 127
        %v1374 = vshll.u32 %v1373, 23
        %v1375 = vor.u32 4788187, %v1374
        %v1376 = vand.u32 2147483647, %v1375
        %v1378 = vcvt.s32.f32 %v1371
        %v1379 = vmul.f32 %v1378, %v1376
        %v1380 = vxor.u32 %v1379, 2147483648
        %v1381 = vsel %vm1260, %v1380, %v1379
        %v1382 = vsub.s32 4, %v1358
        %v1383 = vsel %vm1260, %v1382, %v1358
        %v1384 = vsel %vm1259, %v326, %v1381
        %v1385 = vsel %vm1259, 0, %v1383
        %v1386 = vmul.f32 %v1384, %v1384
        %v1387 = vmul.f32 %v1386, -0.001358992
        %v1388 = vadd.f32 %v1387, 0.041655596
        %v1389 = vmul.f32 %v1386, %v1388
        %v1390 = vadd.f32 %v1389, -0.4999988
        %v1391 = vmul.f32 %v1386, %v1390
        %v1392 = vadd.f32 1.0, %v1391
        %v1393 = vmul.f32 %v1384, %v1384
        %v1394 = vmul.f32 %v1393, -0.00019511016
        %v1395 = vadd.f32 %v1394, 0.008332121
        %v1396 = vmul.f32 %v1393, %v1395
        %v1397 = vadd.f32 %v1396, -0.16666654
        %v1398 = vmul.f32 %v1393, %v1397
        %v1399 = vadd.f32 %v1398, 1.0
        %v1400 = vmul.f32 %v1399, %v1384
        %vm1401 = vweird.f32 %v326
        %v1402 = vadd.s32 %v1385, 3
        %v1403 = vand.u32 %v1402, 3
        %vm1404 = vcmp.lt.s32.totalorder %v1403, 2
        %vm1405 = vcmp.eq.s32.totalorder %v1403, 0
        %v1406 = vxor.u32 %v1400, 2147483648
        %v1407 = vsel %vm1405, %v1392, %v1406
        %vm1408 = vcmp.eq.s32.totalorder %v1403, 2
        %v1409 = vxor.u32 %v1392, 2147483648
        %v1410 = vsel %vm1408, %v1409, %v1400
        %v1411 = vsel %vm1404, %v1407, %v1410
        %v1412 = vsel %vm1401, nan, %v1411
        %v1413 = vand.u32 2147483647, %v327
        %vm1414 = vcmp.le.f32.partialorder %v1413, 0.7853982
        %vm1415 = vcmp.lt.s32.totalorder %v327, 0
        %v1416 = vand.u32 %v327, 2139095040
        %v1417 = vshrl.u32 %v1416, 23
        %v1418 = vsub.s32 %v1417, 127
        %v1419 = vand.u32 2147483647, %v327
        %v1420 = vand.u32 %v1419, 8388607
        %v1421 = vor.u32 %v1420, 8388608
        %v1422 = vsub.s32 0, %v1421
        %v1423 = vadd.s32 %v1418, 1
        %vm1424 = vcmp.gt.s32.totalorder %v1423, 0
        %v1425 = vsel %vm1424, %v1423, 0
        %v1426 = vshrl.u32 %v1425, 5
        %v1427 = vand.u32 %v1425, 31
        %v1428 = vsub.s32 32, %v1427
        %v1429 = vshrl.u32 683565275, %v1428
        %v1430 = vshll.u32 683565275, %v1427
        %v1431 = vshrl.u32 2475754826, %v1428
        %v1432 = vor.u32 %v1430, %v1431
        %v1433 = vshll.u32 2475754826, %v1427
        %v1434 = vshrl.u32 2131351028, %v1428
        %v1435 = vor.u32 %v1433, %v1434
        %v1436 = vshll.u32 2131351028, %v1427
        %v1437 = vshrl.u32 2102212464, %v1428
        %v1438 = vor.u32 %v1436, %v1437
        %v1439 = vshll.u32 2102212464, %v1427
        %v1440 = vshrl.u32 920167782, %v1428
        %v1441 = vor.u32 %v1439, %v1440
        %v1442 = vshll.u32 920167782, %v1427
        %v1443 = vshrl.u32 1326507024, %v1428
        %v1444 = vor.u32 %v1442, %v1443
        %vm1445 = vcmp.lt.s32.totalorder %v1426, 1
        %vm1446 = vcmp.lt.s32.totalorder %v1426, 2
        %vm1447 = vcmp.lt.s32.totalorder %v1426, 3
        %vm1448 = vcmp.lt.s32.totalorder %v1426, 4
        %v1449 = vsel %vm1445, %v1429, %v1432
        %v1450 = vsel %vm1448, %v1438, 2102212464
        %v1451 = vsel %vm1447, %v1435, %v1450
        %v1452 = vsel %vm1446, %v1449, %v1451
        %v1453 = vsel %vm1445, %v1432, %v1435
        %v1454 = vsel %vm1448, %v1441, 920167782
        %v1455 = vsel %vm1447, %v1438, %v1454
        %v1456 = vsel %vm1446, %v1453, %v1455
        %v1457 = vsel %vm1445, %v1435, %v1438
        %v1458 = vsel %vm1448, %v1444, 1326507024
        %v1459 = vsel %vm1447, %v1441, %v1458
        %v1460 = vsel %vm1446, %v1457, %v1459
        %v1461 = vshll.u32 %v1421, 8
        %v1462 = vand.u32 %v1461, 65535
        %v1463 = vshrl.u32 %v1461, 16
        %v1464 = vand.u32 %v1460, 65535
        %v1465 = vshrl.u32 %v1460, 16
        %v1466 = vmul.u32 %v1462, %v1464
        %v1467 = vmul.u32 %v1462, %v1465
        %v1468 = vmul.u32 %v1463, %v1464
        %v1469 = vmul.u32 %v1463, %v1465
        %v1470 = vshll.u32 %v1467, 16
        %v1471 = vshrl.u32 %v1467, 16
        %v1472 = vshll.u32 %v1468, 16
        %v1473 = vshrl.u32 %v1468, 16
        %vm1474 = vc.u32 %v1466, %v1470
        %v1475 = vsel %vm1474, 1, 0
        %v1476 = vadd.s32 %v1466, %v1470
        %v1477 = vadd.s32 %v1469, %v1475
        %vm1478 = vc.u32 %v1476, %v1472
        %v1479 = vsel %vm1478, 1, 0
        %v1480 = vadd.s32 %v1476, %v1472
        %v1481 = vadd.s32 %v1477, %v1479
        %v1482 = vadd.s32 %v1481, %v1471
        %v1483 = vadd.s32 %v1482, %v1473
        %v1484 = vand.u32 %v1461, 65535
        %v1485 = vshrl.u32 %v1461, 16
        %v1486 = vand.u32 %v1456, 65535
        %v1487 = vshrl.u32 %v1456, 16
        %v1488 = vmul.u32 %v1484, %v1486
        %v1489 = vmul.u32 %v1484, %v1487
        %v1490 = vmul.u32 %v1485, %v1486
        %v1491 = vmul.u32 %v1485, %v1487
        %v1492 = vshll.u32 %v1489, 16
        %v1493 = vshrl.u32 %v1489, 16
        %v1494 = vshll.u32 %v1490, 16
        %v1495 = vshrl.u32 %v1490, 16
        %vm1496 = vc.u32 %v1488, %v1492
        %v1497 = vsel %vm1496, 1, 0
        %v1498 = vadd.s32 %v1488, %v1492
        %v1499 = vadd.s32 %v1491, %v1497
        %vm1500 = vc.u32 %v1498, %v1494
        %v1501 = vsel %vm1500, 1, 0
        %v1502 = vadd.s32 %v1498, %v1494
        %v1503 = vadd.s32 %v1499, %v1501
        %v1504 = vadd.s32 %v1503, %v1493
        %v1505 = vadd.s32 %v1504, %v1495
        %v1506 = vmul.u32 %v1461, %v1452
        %v1507 = vadd.s32 %v1483, %v1502
        %vm1508 = vc.u32 %v1483, %v1502
        %v1509 = vadd.s32 %v1505, 1
        %v1510 = vsel %vm1508, %v1509, %v1505
        %v1511 = vadd.s32 %v1506, %v1510
        %v1512 = vadd.s32 %v1511, 536870912
        %v1513 = vshrl.u32 %v1512, 30
        %v1514 = vshll.u32 %v1513, 30
        %v1515 = vsub.s32 %v1511, %v1514
        %vm1516 = vcmp.lt.s32.totalorder %v1515, 0
        %v1517 = vsub.s32 0, %v1515
        %v1518 = vsel %vm1516, %v1517, %v1515
        %v1519 = vclz %v1518
        %v1520 = vsub.s32 %v1519, 2
        %vm1521 = vcmp.gt.s32.totalorder 0, %v1520
        %v1522 = vsel %vm1521, 0, %v1520
        %v1523 = vsub.s32 32, %v1522
        %v1524 = vshll.u32 %v1515, %v1522
        %v1525 = vshrl.u32 %v1507, %v1523
        %v1526 = vor.u32 %v1524, %v1525
        %v1527 = vsub.s32 4294967266, %v1522
        %v1528 = vadd.s32 %v1527, 127
        %v1529 = vshll.u32 %v1528, 23
        %v1530 = vor.u32 4788187, %v1529
        %v1531 = vand.u32 2147483647, %v1530
        %v1533 = vcvt.s32.f32 %v1526
        %v1534 = vmul.f32 %v1533, %v1531
        %v1535 = vxor.u32 %v1534, 2147483648
        %v1536 = vsel %vm1415, %v1535, %v1534
        %v1537 = vsub.s32 4, %v1513
        %v1538 = vsel %vm1415, %v1537, %v1513
        %v1539 = vsel %vm1414, %v327, %v1536
        %v1540 = vsel %vm1414, 0, %v1538
        %v1541 = vmul.f32 %v1539, %v1539
        %v1542 = vmul.f32 %v1541, -0.001358992
        %v1543 = vadd.f32 %v1542, 0.041655596
        %v1544 = vmul.f32 %v1541, %v1543
        %v1545 = vadd.f32 %v1544, -0.4999988
        %v1546 = vmul.f32 %v1541, %v1545
        %v1547 = vadd.f32 1.0, %v1546
        %v1548 = vmul.f32 %v1539, %v1539
        %v1549 = vmul.f32 %v1548, -0.00019511016
        %v1550 = vadd.f32 %v1549, 0.008332121
        %v1551 = vmul.f32 %v1548, %v1550
        %v1552 = vadd.f32 %v1551, -0.16666654
        %v1553 = vmul.f32 %v1548, %v1552
        %v1554 = vadd.f32 %v1553, 1.0
        %v1555 = vmul.f32 %v1554, %v1539
        %vm1556 = vweird.f32 %v327
        %v1557 = vadd.s32 %v1540, 3
        %v1558 = vand.u32 %v1557, 3
        %vm1559 = vcmp.lt.s32.totalorder %v1558, 2
        %vm1560 = vcmp.eq.s32.totalorder %v1558, 0
        %v1561 = vxor.u32 %v1555, 2147483648
        %v1562 = vsel %vm1560, %v1547, %v1561
        %vm1563 = vcmp.eq.s32.totalorder %v1558, 2
        %v1564 = vxor.u32 %v1547, 2147483648
        %v1565 = vsel %vm1563, %v1564, %v1555
        %v1566 = vsel %vm1559, %v1562, %v1565
        %v1567 = vsel %vm1556, nan, %v1566
        %1568 = vst [vmem:[%s237] sm:$0xff] %v482
        %1569 = vst [vmem:[%s237 + $0x8] sm:$0xff] %v637
        %1570 = vst [vmem:[%s237 + $0x10] sm:$0xff] %v792
        %1571 = vst [vmem:[%s237 + $0x18] sm:$0xff] %v947
        %1572 = vst [vmem:[%s237 + $0x20] sm:$0xff] %v1102
        %1573 = vst [vmem:[%s237 + $0x28] sm:$0xff] %v1257
        %1574 = vst [vmem:[%s237 + $0x30] sm:$0xff] %v1412
        %1575 = vst [vmem:[%s237 + $0x38] sm:$0xff] %v1567
        %v1577 = vperm.slane %v266, 0
        %v1578 = vperm.slane %v266, 1
        %v1581 = vmul.f32 %v1577, %v275
        %v1582 = vmul.f32 %v1578, %v275
        %v1583 = vmul.f32 %v1577, %v280
        %v1584 = vmul.f32 %v1578, %v280
        %v1585 = vmul.f32 %v1577, %v285
        %v1586 = vmul.f32 %v1578, %v285
        %v1587 = vmul.f32 %v1577, %v290
        %v1588 = vmul.f32 %v1578, %v290
        %v1589 = vadd.f32 %v1581, %v303
        %v1590 = vadd.f32 %v1582, %v303
        %v1591 = vadd.f32 %v1583, %v308
        %v1592 = vadd.f32 %v1584, %v308
        %v1593 = vadd.f32 %v1585, %v313
        %v1594 = vadd.f32 %v1586, %v313
        %v1595 = vadd.f32 %v1587, %v318
        %v1596 = vadd.f32 %v1588, %v318
        %v1597 = vand.u32 2147483647, %v1589
        %vm1598 = vcmp.le.f32.partialorder %v1597, 0.7853982
        %vm1599 = vcmp.lt.s32.totalorder %v1589, 0
        %v1600 = vand.u32 %v1589, 2139095040
        %v1601 = vshrl.u32 %v1600, 23
        %v1602 = vsub.s32 %v1601, 127
        %v1603 = vand.u32 2147483647, %v1589
        %v1604 = vand.u32 %v1603, 8388607
        %v1605 = vor.u32 %v1604, 8388608
        %v1606 = vsub.s32 0, %v1605
        %v1607 = vadd.s32 %v1602, 1
        %vm1608 = vcmp.gt.s32.totalorder %v1607, 0
        %v1609 = vsel %vm1608, %v1607, 0
        %v1610 = vshrl.u32 %v1609, 5
        %v1611 = vand.u32 %v1609, 31
        %v1612 = vsub.s32 32, %v1611
        %v1613 = vshrl.u32 683565275, %v1612
        %v1614 = vshll.u32 683565275, %v1611
        %v1615 = vshrl.u32 2475754826, %v1612
        %v1616 = vor.u32 %v1614, %v1615
        %v1617 = vshll.u32 2475754826, %v1611
        %v1618 = vshrl.u32 2131351028, %v1612
        %v1619 = vor.u32 %v1617, %v1618
        %v1620 = vshll.u32 2131351028, %v1611
        %v1621 = vshrl.u32 2102212464, %v1612
        %v1622 = vor.u32 %v1620, %v1621
        %v1623 = vshll.u32 2102212464, %v1611
        %v1624 = vshrl.u32 920167782, %v1612
        %v1625 = vor.u32 %v1623, %v1624
        %v1626 = vshll.u32 920167782, %v1611
        %v1627 = vshrl.u32 1326507024, %v1612
        %v1628 = vor.u32 %v1626, %v1627
        %vm1629 = vcmp.lt.s32.totalorder %v1610, 1
        %vm1630 = vcmp.lt.s32.totalorder %v1610, 2
        %vm1631 = vcmp.lt.s32.totalorder %v1610, 3
        %vm1632 = vcmp.lt.s32.totalorder %v1610, 4
        %v1633 = vsel %vm1629, %v1613, %v1616
        %v1634 = vsel %vm1632, %v1622, 2102212464
        %v1635 = vsel %vm1631, %v1619, %v1634
        %v1636 = vsel %vm1630, %v1633, %v1635
        %v1637 = vsel %vm1629, %v1616, %v1619
        %v1638 = vsel %vm1632, %v1625, 920167782
        %v1639 = vsel %vm1631, %v1622, %v1638
        %v1640 = vsel %vm1630, %v1637, %v1639
        %v1641 = vsel %vm1629, %v1619, %v1622
        %v1642 = vsel %vm1632, %v1628, 1326507024
        %v1643 = vsel %vm1631, %v1625, %v1642
        %v1644 = vsel %vm1630, %v1641, %v1643
        %v1645 = vshll.u32 %v1605, 8
        %v1646 = vand.u32 %v1645, 65535
        %v1647 = vshrl.u32 %v1645, 16
        %v1648 = vand.u32 %v1644, 65535
        %v1649 = vshrl.u32 %v1644, 16
        %v1650 = vmul.u32 %v1646, %v1648
        %v1651 = vmul.u32 %v1646, %v1649
        %v1652 = vmul.u32 %v1647, %v1648
        %v1653 = vmul.u32 %v1647, %v1649
        %v1654 = vshll.u32 %v1651, 16
        %v1655 = vshrl.u32 %v1651, 16
        %v1656 = vshll.u32 %v1652, 16
        %v1657 = vshrl.u32 %v1652, 16
        %vm1658 = vc.u32 %v1650, %v1654
        %v1659 = vsel %vm1658, 1, 0
        %v1660 = vadd.s32 %v1650, %v1654
        %v1661 = vadd.s32 %v1653, %v1659
        %vm1662 = vc.u32 %v1660, %v1656
        %v1663 = vsel %vm1662, 1, 0
        %v1664 = vadd.s32 %v1660, %v1656
        %v1665 = vadd.s32 %v1661, %v1663
        %v1666 = vadd.s32 %v1665, %v1655
        %v1667 = vadd.s32 %v1666, %v1657
        %v1668 = vand.u32 %v1645, 65535
        %v1669 = vshrl.u32 %v1645, 16
        %v1670 = vand.u32 %v1640, 65535
        %v1671 = vshrl.u32 %v1640, 16
        %v1672 = vmul.u32 %v1668, %v1670
        %v1673 = vmul.u32 %v1668, %v1671
        %v1674 = vmul.u32 %v1669, %v1670
        %v1675 = vmul.u32 %v1669, %v1671
        %v1676 = vshll.u32 %v1673, 16
        %v1677 = vshrl.u32 %v1673, 16
        %v1678 = vshll.u32 %v1674, 16
        %v1679 = vshrl.u32 %v1674, 16
        %vm1680 = vc.u32 %v1672, %v1676
        %v1681 = vsel %vm1680, 1, 0
        %v1682 = vadd.s32 %v1672, %v1676
        %v1683 = vadd.s32 %v1675, %v1681
        %vm1684 = vc.u32 %v1682, %v1678
        %v1685 = vsel %vm1684, 1, 0
        %v1686 = vadd.s32 %v1682, %v1678
        %v1687 = vadd.s32 %v1683, %v1685
        %v1688 = vadd.s32 %v1687, %v1677
        %v1689 = vadd.s32 %v1688, %v1679
        %v1690 = vmul.u32 %v1645, %v1636
        %v1691 = vadd.s32 %v1667, %v1686
        %vm1692 = vc.u32 %v1667, %v1686
        %v1693 = vadd.s32 %v1689, 1
        %v1694 = vsel %vm1692, %v1693, %v1689
        %v1695 = vadd.s32 %v1690, %v1694
        %v1696 = vadd.s32 %v1695, 536870912
        %v1697 = vshrl.u32 %v1696, 30
        %v1698 = vshll.u32 %v1697, 30
        %v1699 = vsub.s32 %v1695, %v1698
        %vm1700 = vcmp.lt.s32.totalorder %v1699, 0
        %v1701 = vsub.s32 0, %v1699
        %v1702 = vsel %vm1700, %v1701, %v1699
        %v1703 = vclz %v1702
        %v1704 = vsub.s32 %v1703, 2
        %vm1705 = vcmp.gt.s32.totalorder 0, %v1704
        %v1706 = vsel %vm1705, 0, %v1704
        %v1707 = vsub.s32 32, %v1706
        %v1708 = vshll.u32 %v1699, %v1706
        %v1709 = vshrl.u32 %v1691, %v1707
        %v1710 = vor.u32 %v1708, %v1709
        %v1711 = vsub.s32 4294967266, %v1706
        %v1712 = vadd.s32 %v1711, 127
        %v1713 = vshll.u32 %v1712, 23
        %v1714 = vor.u32 4788187, %v1713
        %v1715 = vand.u32 2147483647, %v1714
        %v1717 = vcvt.s32.f32 %v1710
        %v1718 = vmul.f32 %v1717, %v1715
        %v1719 = vxor.u32 %v1718, 2147483648
        %v1720 = vsel %vm1599, %v1719, %v1718
        %v1721 = vsub.s32 4, %v1697
        %v1722 = vsel %vm1599, %v1721, %v1697
        %v1723 = vsel %vm1598, %v1589, %v1720
        %v1724 = vsel %vm1598, 0, %v1722
        %v1725 = vmul.f32 %v1723, %v1723
        %v1726 = vmul.f32 %v1725, -0.001358992
        %v1727 = vadd.f32 %v1726, 0.041655596
        %v1728 = vmul.f32 %v1725, %v1727
        %v1729 = vadd.f32 %v1728, -0.4999988
        %v1730 = vmul.f32 %v1725, %v1729
        %v1731 = vadd.f32 1.0, %v1730
        %v1732 = vmul.f32 %v1723, %v1723
        %v1733 = vmul.f32 %v1732, -0.00019511016
        %v1734 = vadd.f32 %v1733, 0.008332121
        %v1735 = vmul.f32 %v1732, %v1734
        %v1736 = vadd.f32 %v1735, -0.16666654
        %v1737 = vmul.f32 %v1732, %v1736
        %v1738 = vadd.f32 %v1737, 1.0
        %v1739 = vmul.f32 %v1738, %v1723
        %vm1740 = vweird.f32 %v1589
        %v1741 = vadd.s32 %v1724, 3
        %v1742 = vand.u32 %v1741, 3
        %vm1743 = vcmp.lt.s32.totalorder %v1742, 2
        %vm1744 = vcmp.eq.s32.totalorder %v1742, 0
        %v1745 = vxor.u32 %v1739, 2147483648
        %v1746 = vsel %vm1744, %v1731, %v1745
        %vm1747 = vcmp.eq.s32.totalorder %v1742, 2
        %v1748 = vxor.u32 %v1731, 2147483648
        %v1749 = vsel %vm1747, %v1748, %v1739
        %v1750 = vsel %vm1743, %v1746, %v1749
        %v1751 = vsel %vm1740, nan, %v1750
        %v1752 = vand.u32 2147483647, %v1590
        %vm1753 = vcmp.le.f32.partialorder %v1752, 0.7853982
        %vm1754 = vcmp.lt.s32.totalorder %v1590, 0
        %v1755 = vand.u32 %v1590, 2139095040
        %v1756 = vshrl.u32 %v1755, 23
        %v1757 = vsub.s32 %v1756, 127
        %v1758 = vand.u32 2147483647, %v1590
        %v1759 = vand.u32 %v1758, 8388607
        %v1760 = vor.u32 %v1759, 8388608
        %v1761 = vsub.s32 0, %v1760
        %v1762 = vadd.s32 %v1757, 1
        %vm1763 = vcmp.gt.s32.totalorder %v1762, 0
        %v1764 = vsel %vm1763, %v1762, 0
        %v1765 = vshrl.u32 %v1764, 5
        %v1766 = vand.u32 %v1764, 31
        %v1767 = vsub.s32 32, %v1766
        %v1768 = vshrl.u32 683565275, %v1767
        %v1769 = vshll.u32 683565275, %v1766
        %v1770 = vshrl.u32 2475754826, %v1767
        %v1771 = vor.u32 %v1769, %v1770
        %v1772 = vshll.u32 2475754826, %v1766
        %v1773 = vshrl.u32 2131351028, %v1767
        %v1774 = vor.u32 %v1772, %v1773
        %v1775 = vshll.u32 2131351028, %v1766
        %v1776 = vshrl.u32 2102212464, %v1767
        %v1777 = vor.u32 %v1775, %v1776
        %v1778 = vshll.u32 2102212464, %v1766
        %v1779 = vshrl.u32 920167782, %v1767
        %v1780 = vor.u32 %v1778, %v1779
        %v1781 = vshll.u32 920167782, %v1766
        %v1782 = vshrl.u32 1326507024, %v1767
        %v1783 = vor.u32 %v1781, %v1782
        %vm1784 = vcmp.lt.s32.totalorder %v1765, 1
        %vm1785 = vcmp.lt.s32.totalorder %v1765, 2
        %vm1786 = vcmp.lt.s32.totalorder %v1765, 3
        %vm1787 = vcmp.lt.s32.totalorder %v1765, 4
        %v1788 = vsel %vm1784, %v1768, %v1771
        %v1789 = vsel %vm1787, %v1777, 2102212464
        %v1790 = vsel %vm1786, %v1774, %v1789
        %v1791 = vsel %vm1785, %v1788, %v1790
        %v1792 = vsel %vm1784, %v1771, %v1774
        %v1793 = vsel %vm1787, %v1780, 920167782
        %v1794 = vsel %vm1786, %v1777, %v1793
        %v1795 = vsel %vm1785, %v1792, %v1794
        %v1796 = vsel %vm1784, %v1774, %v1777
        %v1797 = vsel %vm1787, %v1783, 1326507024
        %v1798 = vsel %vm1786, %v1780, %v1797
        %v1799 = vsel %vm1785, %v1796, %v1798
        %v1800 = vshll.u32 %v1760, 8
        %v1801 = vand.u32 %v1800, 65535
        %v1802 = vshrl.u32 %v1800, 16
        %v1803 = vand.u32 %v1799, 65535
        %v1804 = vshrl.u32 %v1799, 16
        %v1805 = vmul.u32 %v1801, %v1803
        %v1806 = vmul.u32 %v1801, %v1804
        %v1807 = vmul.u32 %v1802, %v1803
        %v1808 = vmul.u32 %v1802, %v1804
        %v1809 = vshll.u32 %v1806, 16
        %v1810 = vshrl.u32 %v1806, 16
        %v1811 = vshll.u32 %v1807, 16
        %v1812 = vshrl.u32 %v1807, 16
        %vm1813 = vc.u32 %v1805, %v1809
        %v1814 = vsel %vm1813, 1, 0
        %v1815 = vadd.s32 %v1805, %v1809
        %v1816 = vadd.s32 %v1808, %v1814
        %vm1817 = vc.u32 %v1815, %v1811
        %v1818 = vsel %vm1817, 1, 0
        %v1819 = vadd.s32 %v1815, %v1811
        %v1820 = vadd.s32 %v1816, %v1818
        %v1821 = vadd.s32 %v1820, %v1810
        %v1822 = vadd.s32 %v1821, %v1812
        %v1823 = vand.u32 %v1800, 65535
        %v1824 = vshrl.u32 %v1800, 16
        %v1825 = vand.u32 %v1795, 65535
        %v1826 = vshrl.u32 %v1795, 16
        %v1827 = vmul.u32 %v1823, %v1825
        %v1828 = vmul.u32 %v1823, %v1826
        %v1829 = vmul.u32 %v1824, %v1825
        %v1830 = vmul.u32 %v1824, %v1826
        %v1831 = vshll.u32 %v1828, 16
        %v1832 = vshrl.u32 %v1828, 16
        %v1833 = vshll.u32 %v1829, 16
        %v1834 = vshrl.u32 %v1829, 16
        %vm1835 = vc.u32 %v1827, %v1831
        %v1836 = vsel %vm1835, 1, 0
        %v1837 = vadd.s32 %v1827, %v1831
        %v1838 = vadd.s32 %v1830, %v1836
        %vm1839 = vc.u32 %v1837, %v1833
        %v1840 = vsel %vm1839, 1, 0
        %v1841 = vadd.s32 %v1837, %v1833
        %v1842 = vadd.s32 %v1838, %v1840
        %v1843 = vadd.s32 %v1842, %v1832
        %v1844 = vadd.s32 %v1843, %v1834
        %v1845 = vmul.u32 %v1800, %v1791
        %v1846 = vadd.s32 %v1822, %v1841
        %vm1847 = vc.u32 %v1822, %v1841
        %v1848 = vadd.s32 %v1844, 1
        %v1849 = vsel %vm1847, %v1848, %v1844
        %v1850 = vadd.s32 %v1845, %v1849
        %v1851 = vadd.s32 %v1850, 536870912
        %v1852 = vshrl.u32 %v1851, 30
        %v1853 = vshll.u32 %v1852, 30
        %v1854 = vsub.s32 %v1850, %v1853
        %vm1855 = vcmp.lt.s32.totalorder %v1854, 0
        %v1856 = vsub.s32 0, %v1854
        %v1857 = vsel %vm1855, %v1856, %v1854
        %v1858 = vclz %v1857
        %v1859 = vsub.s32 %v1858, 2
        %vm1860 = vcmp.gt.s32.totalorder 0, %v1859
        %v1861 = vsel %vm1860, 0, %v1859
        %v1862 = vsub.s32 32, %v1861
        %v1863 = vshll.u32 %v1854, %v1861
        %v1864 = vshrl.u32 %v1846, %v1862
        %v1865 = vor.u32 %v1863, %v1864
        %v1866 = vsub.s32 4294967266, %v1861
        %v1867 = vadd.s32 %v1866, 127
        %v1868 = vshll.u32 %v1867, 23
        %v1869 = vor.u32 4788187, %v1868
        %v1870 = vand.u32 2147483647, %v1869
        %v1872 = vcvt.s32.f32 %v1865
        %v1873 = vmul.f32 %v1872, %v1870
        %v1874 = vxor.u32 %v1873, 2147483648
        %v1875 = vsel %vm1754, %v1874, %v1873
        %v1876 = vsub.s32 4, %v1852
        %v1877 = vsel %vm1754, %v1876, %v1852
        %v1878 = vsel %vm1753, %v1590, %v1875
        %v1879 = vsel %vm1753, 0, %v1877
        %v1880 = vmul.f32 %v1878, %v1878
        %v1881 = vmul.f32 %v1880, -0.001358992
        %v1882 = vadd.f32 %v1881, 0.041655596
        %v1883 = vmul.f32 %v1880, %v1882
        %v1884 = vadd.f32 %v1883, -0.4999988
        %v1885 = vmul.f32 %v1880, %v1884
        %v1886 = vadd.f32 1.0, %v1885
        %v1887 = vmul.f32 %v1878, %v1878
        %v1888 = vmul.f32 %v1887, -0.00019511016
        %v1889 = vadd.f32 %v1888, 0.008332121
        %v1890 = vmul.f32 %v1887, %v1889
        %v1891 = vadd.f32 %v1890, -0.16666654
        %v1892 = vmul.f32 %v1887, %v1891
        %v1893 = vadd.f32 %v1892, 1.0
        %v1894 = vmul.f32 %v1893, %v1878
        %vm1895 = vweird.f32 %v1590
        %v1896 = vadd.s32 %v1879, 3
        %v1897 = vand.u32 %v1896, 3
        %vm1898 = vcmp.lt.s32.totalorder %v1897, 2
        %vm1899 = vcmp.eq.s32.totalorder %v1897, 0
        %v1900 = vxor.u32 %v1894, 2147483648
        %v1901 = vsel %vm1899, %v1886, %v1900
        %vm1902 = vcmp.eq.s32.totalorder %v1897, 2
        %v1903 = vxor.u32 %v1886, 2147483648
        %v1904 = vsel %vm1902, %v1903, %v1894
        %v1905 = vsel %vm1898, %v1901, %v1904
        %v1906 = vsel %vm1895, nan, %v1905
        %v1907 = vand.u32 2147483647, %v1591
        %vm1908 = vcmp.le.f32.partialorder %v1907, 0.7853982
        %vm1909 = vcmp.lt.s32.totalorder %v1591, 0
        %v1910 = vand.u32 %v1591, 2139095040
        %v1911 = vshrl.u32 %v1910, 23
        %v1912 = vsub.s32 %v1911, 127
        %v1913 = vand.u32 2147483647, %v1591
        %v1914 = vand.u32 %v1913, 8388607
        %v1915 = vor.u32 %v1914, 8388608
        %v1916 = vsub.s32 0, %v1915
        %v1917 = vadd.s32 %v1912, 1
        %vm1918 = vcmp.gt.s32.totalorder %v1917, 0
        %v1919 = vsel %vm1918, %v1917, 0
        %v1920 = vshrl.u32 %v1919, 5
        %v1921 = vand.u32 %v1919, 31
        %v1922 = vsub.s32 32, %v1921
        %v1923 = vshrl.u32 683565275, %v1922
        %v1924 = vshll.u32 683565275, %v1921
        %v1925 = vshrl.u32 2475754826, %v1922
        %v1926 = vor.u32 %v1924, %v1925
        %v1927 = vshll.u32 2475754826, %v1921
        %v1928 = vshrl.u32 2131351028, %v1922
        %v1929 = vor.u32 %v1927, %v1928
        %v1930 = vshll.u32 2131351028, %v1921
        %v1931 = vshrl.u32 2102212464, %v1922
        %v1932 = vor.u32 %v1930, %v1931
        %v1933 = vshll.u32 2102212464, %v1921
        %v1934 = vshrl.u32 920167782, %v1922
        %v1935 = vor.u32 %v1933, %v1934
        %v1936 = vshll.u32 920167782, %v1921
        %v1937 = vshrl.u32 1326507024, %v1922
        %v1938 = vor.u32 %v1936, %v1937
        %vm1939 = vcmp.lt.s32.totalorder %v1920, 1
        %vm1940 = vcmp.lt.s32.totalorder %v1920, 2
        %vm1941 = vcmp.lt.s32.totalorder %v1920, 3
        %vm1942 = vcmp.lt.s32.totalorder %v1920, 4
        %v1943 = vsel %vm1939, %v1923, %v1926
        %v1944 = vsel %vm1942, %v1932, 2102212464
        %v1945 = vsel %vm1941, %v1929, %v1944
        %v1946 = vsel %vm1940, %v1943, %v1945
        %v1947 = vsel %vm1939, %v1926, %v1929
        %v1948 = vsel %vm1942, %v1935, 920167782
        %v1949 = vsel %vm1941, %v1932, %v1948
        %v1950 = vsel %vm1940, %v1947, %v1949
        %v1951 = vsel %vm1939, %v1929, %v1932
        %v1952 = vsel %vm1942, %v1938, 1326507024
        %v1953 = vsel %vm1941, %v1935, %v1952
        %v1954 = vsel %vm1940, %v1951, %v1953
        %v1955 = vshll.u32 %v1915, 8
        %v1956 = vand.u32 %v1955, 65535
        %v1957 = vshrl.u32 %v1955, 16
        %v1958 = vand.u32 %v1954, 65535
        %v1959 = vshrl.u32 %v1954, 16
        %v1960 = vmul.u32 %v1956, %v1958
        %v1961 = vmul.u32 %v1956, %v1959
        %v1962 = vmul.u32 %v1957, %v1958
        %v1963 = vmul.u32 %v1957, %v1959
        %v1964 = vshll.u32 %v1961, 16
        %v1965 = vshrl.u32 %v1961, 16
        %v1966 = vshll.u32 %v1962, 16
        %v1967 = vshrl.u32 %v1962, 16
        %vm1968 = vc.u32 %v1960, %v1964
        %v1969 = vsel %vm1968, 1, 0
        %v1970 = vadd.s32 %v1960, %v1964
        %v1971 = vadd.s32 %v1963, %v1969
        %vm1972 = vc.u32 %v1970, %v1966
        %v1973 = vsel %vm1972, 1, 0
        %v1974 = vadd.s32 %v1970, %v1966
        %v1975 = vadd.s32 %v1971, %v1973
        %v1976 = vadd.s32 %v1975, %v1965
        %v1977 = vadd.s32 %v1976, %v1967
        %v1978 = vand.u32 %v1955, 65535
        %v1979 = vshrl.u32 %v1955, 16
        %v1980 = vand.u32 %v1950, 65535
        %v1981 = vshrl.u32 %v1950, 16
        %v1982 = vmul.u32 %v1978, %v1980
        %v1983 = vmul.u32 %v1978, %v1981
        %v1984 = vmul.u32 %v1979, %v1980
        %v1985 = vmul.u32 %v1979, %v1981
        %v1986 = vshll.u32 %v1983, 16
        %v1987 = vshrl.u32 %v1983, 16
        %v1988 = vshll.u32 %v1984, 16
        %v1989 = vshrl.u32 %v1984, 16
        %vm1990 = vc.u32 %v1982, %v1986
        %v1991 = vsel %vm1990, 1, 0
        %v1992 = vadd.s32 %v1982, %v1986
        %v1993 = vadd.s32 %v1985, %v1991
        %vm1994 = vc.u32 %v1992, %v1988
        %v1995 = vsel %vm1994, 1, 0
        %v1996 = vadd.s32 %v1992, %v1988
        %v1997 = vadd.s32 %v1993, %v1995
        %v1998 = vadd.s32 %v1997, %v1987
        %v1999 = vadd.s32 %v1998, %v1989
        %v2000 = vmul.u32 %v1955, %v1946
        %v2001 = vadd.s32 %v1977, %v1996
        %vm2002 = vc.u32 %v1977, %v1996
        %v2003 = vadd.s32 %v1999, 1
        %v2004 = vsel %vm2002, %v2003, %v1999
        %v2005 = vadd.s32 %v2000, %v2004
        %v2006 = vadd.s32 %v2005, 536870912
        %v2007 = vshrl.u32 %v2006, 30
        %v2008 = vshll.u32 %v2007, 30
        %v2009 = vsub.s32 %v2005, %v2008
        %vm2010 = vcmp.lt.s32.totalorder %v2009, 0
        %v2011 = vsub.s32 0, %v2009
        %v2012 = vsel %vm2010, %v2011, %v2009
        %v2013 = vclz %v2012
        %v2014 = vsub.s32 %v2013, 2
        %vm2015 = vcmp.gt.s32.totalorder 0, %v2014
        %v2016 = vsel %vm2015, 0, %v2014
        %v2017 = vsub.s32 32, %v2016
        %v2018 = vshll.u32 %v2009, %v2016
        %v2019 = vshrl.u32 %v2001, %v2017
        %v2020 = vor.u32 %v2018, %v2019
        %v2021 = vsub.s32 4294967266, %v2016
        %v2022 = vadd.s32 %v2021, 127
        %v2023 = vshll.u32 %v2022, 23
        %v2024 = vor.u32 4788187, %v2023
        %v2025 = vand.u32 2147483647, %v2024
        %v2027 = vcvt.s32.f32 %v2020
        %v2028 = vmul.f32 %v2027, %v2025
        %v2029 = vxor.u32 %v2028, 2147483648
        %v2030 = vsel %vm1909, %v2029, %v2028
        %v2031 = vsub.s32 4, %v2007
        %v2032 = vsel %vm1909, %v2031, %v2007
        %v2033 = vsel %vm1908, %v1591, %v2030
        %v2034 = vsel %vm1908, 0, %v2032
        %v2035 = vmul.f32 %v2033, %v2033
        %v2036 = vmul.f32 %v2035, -0.001358992
        %v2037 = vadd.f32 %v2036, 0.041655596
        %v2038 = vmul.f32 %v2035, %v2037
        %v2039 = vadd.f32 %v2038, -0.4999988
        %v2040 = vmul.f32 %v2035, %v2039
        %v2041 = vadd.f32 1.0, %v2040
        %v2042 = vmul.f32 %v2033, %v2033
        %v2043 = vmul.f32 %v2042, -0.00019511016
        %v2044 = vadd.f32 %v2043, 0.008332121
        %v2045 = vmul.f32 %v2042, %v2044
        %v2046 = vadd.f32 %v2045, -0.16666654
        %v2047 = vmul.f32 %v2042, %v2046
        %v2048 = vadd.f32 %v2047, 1.0
        %v2049 = vmul.f32 %v2048, %v2033
        %vm2050 = vweird.f32 %v1591
        %v2051 = vadd.s32 %v2034, 3
        %v2052 = vand.u32 %v2051, 3
        %vm2053 = vcmp.lt.s32.totalorder %v2052, 2
        %vm2054 = vcmp.eq.s32.totalorder %v2052, 0
        %v2055 = vxor.u32 %v2049, 2147483648
        %v2056 = vsel %vm2054, %v2041, %v2055
        %vm2057 = vcmp.eq.s32.totalorder %v2052, 2
        %v2058 = vxor.u32 %v2041, 2147483648
        %v2059 = vsel %vm2057, %v2058, %v2049
        %v2060 = vsel %vm2053, %v2056, %v2059
        %v2061 = vsel %vm2050, nan, %v2060
        %v2062 = vand.u32 2147483647, %v1592
        %vm2063 = vcmp.le.f32.partialorder %v2062, 0.7853982
        %vm2064 = vcmp.lt.s32.totalorder %v1592, 0
        %v2065 = vand.u32 %v1592, 2139095040
        %v2066 = vshrl.u32 %v2065, 23
        %v2067 = vsub.s32 %v2066, 127
        %v2068 = vand.u32 2147483647, %v1592
        %v2069 = vand.u32 %v2068, 8388607
        %v2070 = vor.u32 %v2069, 8388608
        %v2071 = vsub.s32 0, %v2070
        %v2072 = vadd.s32 %v2067, 1
        %vm2073 = vcmp.gt.s32.totalorder %v2072, 0
        %v2074 = vsel %vm2073, %v2072, 0
        %v2075 = vshrl.u32 %v2074, 5
        %v2076 = vand.u32 %v2074, 31
        %v2077 = vsub.s32 32, %v2076
        %v2078 = vshrl.u32 683565275, %v2077
        %v2079 = vshll.u32 683565275, %v2076
        %v2080 = vshrl.u32 2475754826, %v2077
        %v2081 = vor.u32 %v2079, %v2080
        %v2082 = vshll.u32 2475754826, %v2076
        %v2083 = vshrl.u32 2131351028, %v2077
        %v2084 = vor.u32 %v2082, %v2083
        %v2085 = vshll.u32 2131351028, %v2076
        %v2086 = vshrl.u32 2102212464, %v2077
        %v2087 = vor.u32 %v2085, %v2086
        %v2088 = vshll.u32 2102212464, %v2076
        %v2089 = vshrl.u32 920167782, %v2077
        %v2090 = vor.u32 %v2088, %v2089
        %v2091 = vshll.u32 920167782, %v2076
        %v2092 = vshrl.u32 1326507024, %v2077
        %v2093 = vor.u32 %v2091, %v2092
        %vm2094 = vcmp.lt.s32.totalorder %v2075, 1
        %vm2095 = vcmp.lt.s32.totalorder %v2075, 2
        %vm2096 = vcmp.lt.s32.totalorder %v2075, 3
        %vm2097 = vcmp.lt.s32.totalorder %v2075, 4
        %v2098 = vsel %vm2094, %v2078, %v2081
        %v2099 = vsel %vm2097, %v2087, 2102212464
        %v2100 = vsel %vm2096, %v2084, %v2099
        %v2101 = vsel %vm2095, %v2098, %v2100
        %v2102 = vsel %vm2094, %v2081, %v2084
        %v2103 = vsel %vm2097, %v2090, 920167782
        %v2104 = vsel %vm2096, %v2087, %v2103
        %v2105 = vsel %vm2095, %v2102, %v2104
        %v2106 = vsel %vm2094, %v2084, %v2087
        %v2107 = vsel %vm2097, %v2093, 1326507024
        %v2108 = vsel %vm2096, %v2090, %v2107
        %v2109 = vsel %vm2095, %v2106, %v2108
        %v2110 = vshll.u32 %v2070, 8
        %v2111 = vand.u32 %v2110, 65535
        %v2112 = vshrl.u32 %v2110, 16
        %v2113 = vand.u32 %v2109, 65535
        %v2114 = vshrl.u32 %v2109, 16
        %v2115 = vmul.u32 %v2111, %v2113
        %v2116 = vmul.u32 %v2111, %v2114
        %v2117 = vmul.u32 %v2112, %v2113
        %v2118 = vmul.u32 %v2112, %v2114
        %v2119 = vshll.u32 %v2116, 16
        %v2120 = vshrl.u32 %v2116, 16
        %v2121 = vshll.u32 %v2117, 16
        %v2122 = vshrl.u32 %v2117, 16
        %vm2123 = vc.u32 %v2115, %v2119
        %v2124 = vsel %vm2123, 1, 0
        %v2125 = vadd.s32 %v2115, %v2119
        %v2126 = vadd.s32 %v2118, %v2124
        %vm2127 = vc.u32 %v2125, %v2121
        %v2128 = vsel %vm2127, 1, 0
        %v2129 = vadd.s32 %v2125, %v2121
        %v2130 = vadd.s32 %v2126, %v2128
        %v2131 = vadd.s32 %v2130, %v2120
        %v2132 = vadd.s32 %v2131, %v2122
        %v2133 = vand.u32 %v2110, 65535
        %v2134 = vshrl.u32 %v2110, 16
        %v2135 = vand.u32 %v2105, 65535
        %v2136 = vshrl.u32 %v2105, 16
        %v2137 = vmul.u32 %v2133, %v2135
        %v2138 = vmul.u32 %v2133, %v2136
        %v2139 = vmul.u32 %v2134, %v2135
        %v2140 = vmul.u32 %v2134, %v2136
        %v2141 = vshll.u32 %v2138, 16
        %v2142 = vshrl.u32 %v2138, 16
        %v2143 = vshll.u32 %v2139, 16
        %v2144 = vshrl.u32 %v2139, 16
        %vm2145 = vc.u32 %v2137, %v2141
        %v2146 = vsel %vm2145, 1, 0
        %v2147 = vadd.s32 %v2137, %v2141
        %v2148 = vadd.s32 %v2140, %v2146
        %vm2149 = vc.u32 %v2147, %v2143
        %v2150 = vsel %vm2149, 1, 0
        %v2151 = vadd.s32 %v2147, %v2143
        %v2152 = vadd.s32 %v2148, %v2150
        %v2153 = vadd.s32 %v2152, %v2142
        %v2154 = vadd.s32 %v2153, %v2144
        %v2155 = vmul.u32 %v2110, %v2101
        %v2156 = vadd.s32 %v2132, %v2151
        %vm2157 = vc.u32 %v2132, %v2151
        %v2158 = vadd.s32 %v2154, 1
        %v2159 = vsel %vm2157, %v2158, %v2154
        %v2160 = vadd.s32 %v2155, %v2159
        %v2161 = vadd.s32 %v2160, 536870912
        %v2162 = vshrl.u32 %v2161, 30
        %v2163 = vshll.u32 %v2162, 30
        %v2164 = vsub.s32 %v2160, %v2163
        %vm2165 = vcmp.lt.s32.totalorder %v2164, 0
        %v2166 = vsub.s32 0, %v2164
        %v2167 = vsel %vm2165, %v2166, %v2164
        %v2168 = vclz %v2167
        %v2169 = vsub.s32 %v2168, 2
        %vm2170 = vcmp.gt.s32.totalorder 0, %v2169
        %v2171 = vsel %vm2170, 0, %v2169
        %v2172 = vsub.s32 32, %v2171
        %v2173 = vshll.u32 %v2164, %v2171
        %v2174 = vshrl.u32 %v2156, %v2172
        %v2175 = vor.u32 %v2173, %v2174
        %v2176 = vsub.s32 4294967266, %v2171
        %v2177 = vadd.s32 %v2176, 127
        %v2178 = vshll.u32 %v2177, 23
        %v2179 = vor.u32 4788187, %v2178
        %v2180 = vand.u32 2147483647, %v2179
        %v2182 = vcvt.s32.f32 %v2175
        %v2183 = vmul.f32 %v2182, %v2180
        %v2184 = vxor.u32 %v2183, 2147483648
        %v2185 = vsel %vm2064, %v2184, %v2183
        %v2186 = vsub.s32 4, %v2162
        %v2187 = vsel %vm2064, %v2186, %v2162
        %v2188 = vsel %vm2063, %v1592, %v2185
        %v2189 = vsel %vm2063, 0, %v2187
        %v2190 = vmul.f32 %v2188, %v2188
        %v2191 = vmul.f32 %v2190, -0.001358992
        %v2192 = vadd.f32 %v2191, 0.041655596
        %v2193 = vmul.f32 %v2190, %v2192
        %v2194 = vadd.f32 %v2193, -0.4999988
        %v2195 = vmul.f32 %v2190, %v2194
        %v2196 = vadd.f32 1.0, %v2195
        %v2197 = vmul.f32 %v2188, %v2188
        %v2198 = vmul.f32 %v2197, -0.00019511016
        %v2199 = vadd.f32 %v2198, 0.008332121
        %v2200 = vmul.f32 %v2197, %v2199
        %v2201 = vadd.f32 %v2200, -0.16666654
        %v2202 = vmul.f32 %v2197, %v2201
        %v2203 = vadd.f32 %v2202, 1.0
        %v2204 = vmul.f32 %v2203, %v2188
        %vm2205 = vweird.f32 %v1592
        %v2206 = vadd.s32 %v2189, 3
        %v2207 = vand.u32 %v2206, 3
        %vm2208 = vcmp.lt.s32.totalorder %v2207, 2
        %vm2209 = vcmp.eq.s32.totalorder %v2207, 0
        %v2210 = vxor.u32 %v2204, 2147483648
        %v2211 = vsel %vm2209, %v2196, %v2210
        %vm2212 = vcmp.eq.s32.totalorder %v2207, 2
        %v2213 = vxor.u32 %v2196, 2147483648
        %v2214 = vsel %vm2212, %v2213, %v2204
        %v2215 = vsel %vm2208, %v2211, %v2214
        %v2216 = vsel %vm2205, nan, %v2215
        %v2217 = vand.u32 2147483647, %v1593
        %vm2218 = vcmp.le.f32.partialorder %v2217, 0.7853982
        %vm2219 = vcmp.lt.s32.totalorder %v1593, 0
        %v2220 = vand.u32 %v1593, 2139095040
        %v2221 = vshrl.u32 %v2220, 23
        %v2222 = vsub.s32 %v2221, 127
        %v2223 = vand.u32 2147483647, %v1593
        %v2224 = vand.u32 %v2223, 8388607
        %v2225 = vor.u32 %v2224, 8388608
        %v2226 = vsub.s32 0, %v2225
        %v2227 = vadd.s32 %v2222, 1
        %vm2228 = vcmp.gt.s32.totalorder %v2227, 0
        %v2229 = vsel %vm2228, %v2227, 0
        %v2230 = vshrl.u32 %v2229, 5
        %v2231 = vand.u32 %v2229, 31
        %v2232 = vsub.s32 32, %v2231
        %v2233 = vshrl.u32 683565275, %v2232
        %v2234 = vshll.u32 683565275, %v2231
        %v2235 = vshrl.u32 2475754826, %v2232
        %v2236 = vor.u32 %v2234, %v2235
        %v2237 = vshll.u32 2475754826, %v2231
        %v2238 = vshrl.u32 2131351028, %v2232
        %v2239 = vor.u32 %v2237, %v2238
        %v2240 = vshll.u32 2131351028, %v2231
        %v2241 = vshrl.u32 2102212464, %v2232
        %v2242 = vor.u32 %v2240, %v2241
        %v2243 = vshll.u32 2102212464, %v2231
        %v2244 = vshrl.u32 920167782, %v2232
        %v2245 = vor.u32 %v2243, %v2244
        %v2246 = vshll.u32 920167782, %v2231
        %v2247 = vshrl.u32 1326507024, %v2232
        %v2248 = vor.u32 %v2246, %v2247
        %vm2249 = vcmp.lt.s32.totalorder %v2230, 1
        %vm2250 = vcmp.lt.s32.totalorder %v2230, 2
        %vm2251 = vcmp.lt.s32.totalorder %v2230, 3
        %vm2252 = vcmp.lt.s32.totalorder %v2230, 4
        %v2253 = vsel %vm2249, %v2233, %v2236
        %v2254 = vsel %vm2252, %v2242, 2102212464
        %v2255 = vsel %vm2251, %v2239, %v2254
        %v2256 = vsel %vm2250, %v2253, %v2255
        %v2257 = vsel %vm2249, %v2236, %v2239
        %v2258 = vsel %vm2252, %v2245, 920167782
        %v2259 = vsel %vm2251, %v2242, %v2258
        %v2260 = vsel %vm2250, %v2257, %v2259
        %v2261 = vsel %vm2249, %v2239, %v2242
        %v2262 = vsel %vm2252, %v2248, 1326507024
        %v2263 = vsel %vm2251, %v2245, %v2262
        %v2264 = vsel %vm2250, %v2261, %v2263
        %v2265 = vshll.u32 %v2225, 8
        %v2266 = vand.u32 %v2265, 65535
        %v2267 = vshrl.u32 %v2265, 16
        %v2268 = vand.u32 %v2264, 65535
        %v2269 = vshrl.u32 %v2264, 16
        %v2270 = vmul.u32 %v2266, %v2268
        %v2271 = vmul.u32 %v2266, %v2269
        %v2272 = vmul.u32 %v2267, %v2268
        %v2273 = vmul.u32 %v2267, %v2269
        %v2274 = vshll.u32 %v2271, 16
        %v2275 = vshrl.u32 %v2271, 16
        %v2276 = vshll.u32 %v2272, 16
        %v2277 = vshrl.u32 %v2272, 16
        %vm2278 = vc.u32 %v2270, %v2274
        %v2279 = vsel %vm2278, 1, 0
        %v2280 = vadd.s32 %v2270, %v2274
        %v2281 = vadd.s32 %v2273, %v2279
        %vm2282 = vc.u32 %v2280, %v2276
        %v2283 = vsel %vm2282, 1, 0
        %v2284 = vadd.s32 %v2280, %v2276
        %v2285 = vadd.s32 %v2281, %v2283
        %v2286 = vadd.s32 %v2285, %v2275
        %v2287 = vadd.s32 %v2286, %v2277
        %v2288 = vand.u32 %v2265, 65535
        %v2289 = vshrl.u32 %v2265, 16
        %v2290 = vand.u32 %v2260, 65535
        %v2291 = vshrl.u32 %v2260, 16
        %v2292 = vmul.u32 %v2288, %v2290
        %v2293 = vmul.u32 %v2288, %v2291
        %v2294 = vmul.u32 %v2289, %v2290
        %v2295 = vmul.u32 %v2289, %v2291
        %v2296 = vshll.u32 %v2293, 16
        %v2297 = vshrl.u32 %v2293, 16
        %v2298 = vshll.u32 %v2294, 16
        %v2299 = vshrl.u32 %v2294, 16
        %vm2300 = vc.u32 %v2292, %v2296
        %v2301 = vsel %vm2300, 1, 0
        %v2302 = vadd.s32 %v2292, %v2296
        %v2303 = vadd.s32 %v2295, %v2301
        %vm2304 = vc.u32 %v2302, %v2298
        %v2305 = vsel %vm2304, 1, 0
        %v2306 = vadd.s32 %v2302, %v2298
        %v2307 = vadd.s32 %v2303, %v2305
        %v2308 = vadd.s32 %v2307, %v2297
        %v2309 = vadd.s32 %v2308, %v2299
        %v2310 = vmul.u32 %v2265, %v2256
        %v2311 = vadd.s32 %v2287, %v2306
        %vm2312 = vc.u32 %v2287, %v2306
        %v2313 = vadd.s32 %v2309, 1
        %v2314 = vsel %vm2312, %v2313, %v2309
        %v2315 = vadd.s32 %v2310, %v2314
        %v2316 = vadd.s32 %v2315, 536870912
        %v2317 = vshrl.u32 %v2316, 30
        %v2318 = vshll.u32 %v2317, 30
        %v2319 = vsub.s32 %v2315, %v2318
        %vm2320 = vcmp.lt.s32.totalorder %v2319, 0
        %v2321 = vsub.s32 0, %v2319
        %v2322 = vsel %vm2320, %v2321, %v2319
        %v2323 = vclz %v2322
        %v2324 = vsub.s32 %v2323, 2
        %vm2325 = vcmp.gt.s32.totalorder 0, %v2324
        %v2326 = vsel %vm2325, 0, %v2324
        %v2327 = vsub.s32 32, %v2326
        %v2328 = vshll.u32 %v2319, %v2326
        %v2329 = vshrl.u32 %v2311, %v2327
        %v2330 = vor.u32 %v2328, %v2329
        %v2331 = vsub.s32 4294967266, %v2326
        %v2332 = vadd.s32 %v2331, 127
        %v2333 = vshll.u32 %v2332, 23
        %v2334 = vor.u32 4788187, %v2333
        %v2335 = vand.u32 2147483647, %v2334
        %v2337 = vcvt.s32.f32 %v2330
        %v2338 = vmul.f32 %v2337, %v2335
        %v2339 = vxor.u32 %v2338, 2147483648
        %v2340 = vsel %vm2219, %v2339, %v2338
        %v2341 = vsub.s32 4, %v2317
        %v2342 = vsel %vm2219, %v2341, %v2317
        %v2343 = vsel %vm2218, %v1593, %v2340
        %v2344 = vsel %vm2218, 0, %v2342
        %v2345 = vmul.f32 %v2343, %v2343
        %v2346 = vmul.f32 %v2345, -0.001358992
        %v2347 = vadd.f32 %v2346, 0.041655596
        %v2348 = vmul.f32 %v2345, %v2347
        %v2349 = vadd.f32 %v2348, -0.4999988
        %v2350 = vmul.f32 %v2345, %v2349
        %v2351 = vadd.f32 1.0, %v2350
        %v2352 = vmul.f32 %v2343, %v2343
        %v2353 = vmul.f32 %v2352, -0.00019511016
        %v2354 = vadd.f32 %v2353, 0.008332121
        %v2355 = vmul.f32 %v2352, %v2354
        %v2356 = vadd.f32 %v2355, -0.16666654
        %v2357 = vmul.f32 %v2352, %v2356
        %v2358 = vadd.f32 %v2357, 1.0
        %v2359 = vmul.f32 %v2358, %v2343
        %vm2360 = vweird.f32 %v1593
        %v2361 = vadd.s32 %v2344, 3
        %v2362 = vand.u32 %v2361, 3
        %vm2363 = vcmp.lt.s32.totalorder %v2362, 2
        %vm2364 = vcmp.eq.s32.totalorder %v2362, 0
        %v2365 = vxor.u32 %v2359, 2147483648
        %v2366 = vsel %vm2364, %v2351, %v2365
        %vm2367 = vcmp.eq.s32.totalorder %v2362, 2
        %v2368 = vxor.u32 %v2351, 2147483648
        %v2369 = vsel %vm2367, %v2368, %v2359
        %v2370 = vsel %vm2363, %v2366, %v2369
        %v2371 = vsel %vm2360, nan, %v2370
        %v2372 = vand.u32 2147483647, %v1594
        %vm2373 = vcmp.le.f32.partialorder %v2372, 0.7853982
        %vm2374 = vcmp.lt.s32.totalorder %v1594, 0
        %v2375 = vand.u32 %v1594, 2139095040
        %v2376 = vshrl.u32 %v2375, 23
        %v2377 = vsub.s32 %v2376, 127
        %v2378 = vand.u32 2147483647, %v1594
        %v2379 = vand.u32 %v2378, 8388607
        %v2380 = vor.u32 %v2379, 8388608
        %v2381 = vsub.s32 0, %v2380
        %v2382 = vadd.s32 %v2377, 1
        %vm2383 = vcmp.gt.s32.totalorder %v2382, 0
        %v2384 = vsel %vm2383, %v2382, 0
        %v2385 = vshrl.u32 %v2384, 5
        %v2386 = vand.u32 %v2384, 31
        %v2387 = vsub.s32 32, %v2386
        %v2388 = vshrl.u32 683565275, %v2387
        %v2389 = vshll.u32 683565275, %v2386
        %v2390 = vshrl.u32 2475754826, %v2387
        %v2391 = vor.u32 %v2389, %v2390
        %v2392 = vshll.u32 2475754826, %v2386
        %v2393 = vshrl.u32 2131351028, %v2387
        %v2394 = vor.u32 %v2392, %v2393
        %v2395 = vshll.u32 2131351028, %v2386
        %v2396 = vshrl.u32 2102212464, %v2387
        %v2397 = vor.u32 %v2395, %v2396
        %v2398 = vshll.u32 2102212464, %v2386
        %v2399 = vshrl.u32 920167782, %v2387
        %v2400 = vor.u32 %v2398, %v2399
        %v2401 = vshll.u32 920167782, %v2386
        %v2402 = vshrl.u32 1326507024, %v2387
        %v2403 = vor.u32 %v2401, %v2402
        %vm2404 = vcmp.lt.s32.totalorder %v2385, 1
        %vm2405 = vcmp.lt.s32.totalorder %v2385, 2
        %vm2406 = vcmp.lt.s32.totalorder %v2385, 3
        %vm2407 = vcmp.lt.s32.totalorder %v2385, 4
        %v2408 = vsel %vm2404, %v2388, %v2391
        %v2409 = vsel %vm2407, %v2397, 2102212464
        %v2410 = vsel %vm2406, %v2394, %v2409
        %v2411 = vsel %vm2405, %v2408, %v2410
        %v2412 = vsel %vm2404, %v2391, %v2394
        %v2413 = vsel %vm2407, %v2400, 920167782
        %v2414 = vsel %vm2406, %v2397, %v2413
        %v2415 = vsel %vm2405, %v2412, %v2414
        %v2416 = vsel %vm2404, %v2394, %v2397
        %v2417 = vsel %vm2407, %v2403, 1326507024
        %v2418 = vsel %vm2406, %v2400, %v2417
        %v2419 = vsel %vm2405, %v2416, %v2418
        %v2420 = vshll.u32 %v2380, 8
        %v2421 = vand.u32 %v2420, 65535
        %v2422 = vshrl.u32 %v2420, 16
        %v2423 = vand.u32 %v2419, 65535
        %v2424 = vshrl.u32 %v2419, 16
        %v2425 = vmul.u32 %v2421, %v2423
        %v2426 = vmul.u32 %v2421, %v2424
        %v2427 = vmul.u32 %v2422, %v2423
        %v2428 = vmul.u32 %v2422, %v2424
        %v2429 = vshll.u32 %v2426, 16
        %v2430 = vshrl.u32 %v2426, 16
        %v2431 = vshll.u32 %v2427, 16
        %v2432 = vshrl.u32 %v2427, 16
        %vm2433 = vc.u32 %v2425, %v2429
        %v2434 = vsel %vm2433, 1, 0
        %v2435 = vadd.s32 %v2425, %v2429
        %v2436 = vadd.s32 %v2428, %v2434
        %vm2437 = vc.u32 %v2435, %v2431
        %v2438 = vsel %vm2437, 1, 0
        %v2439 = vadd.s32 %v2435, %v2431
        %v2440 = vadd.s32 %v2436, %v2438
        %v2441 = vadd.s32 %v2440, %v2430
        %v2442 = vadd.s32 %v2441, %v2432
        %v2443 = vand.u32 %v2420, 65535
        %v2444 = vshrl.u32 %v2420, 16
        %v2445 = vand.u32 %v2415, 65535
        %v2446 = vshrl.u32 %v2415, 16
        %v2447 = vmul.u32 %v2443, %v2445
        %v2448 = vmul.u32 %v2443, %v2446
        %v2449 = vmul.u32 %v2444, %v2445
        %v2450 = vmul.u32 %v2444, %v2446
        %v2451 = vshll.u32 %v2448, 16
        %v2452 = vshrl.u32 %v2448, 16
        %v2453 = vshll.u32 %v2449, 16
        %v2454 = vshrl.u32 %v2449, 16
        %vm2455 = vc.u32 %v2447, %v2451
        %v2456 = vsel %vm2455, 1, 0
        %v2457 = vadd.s32 %v2447, %v2451
        %v2458 = vadd.s32 %v2450, %v2456
        %vm2459 = vc.u32 %v2457, %v2453
        %v2460 = vsel %vm2459, 1, 0
        %v2461 = vadd.s32 %v2457, %v2453
        %v2462 = vadd.s32 %v2458, %v2460
        %v2463 = vadd.s32 %v2462, %v2452
        %v2464 = vadd.s32 %v2463, %v2454
        %v2465 = vmul.u32 %v2420, %v2411
        %v2466 = vadd.s32 %v2442, %v2461
        %vm2467 = vc.u32 %v2442, %v2461
        %v2468 = vadd.s32 %v2464, 1
        %v2469 = vsel %vm2467, %v2468, %v2464
        %v2470 = vadd.s32 %v2465, %v2469
        %v2471 = vadd.s32 %v2470, 536870912
        %v2472 = vshrl.u32 %v2471, 30
        %v2473 = vshll.u32 %v2472, 30
        %v2474 = vsub.s32 %v2470, %v2473
        %vm2475 = vcmp.lt.s32.totalorder %v2474, 0
        %v2476 = vsub.s32 0, %v2474
        %v2477 = vsel %vm2475, %v2476, %v2474
        %v2478 = vclz %v2477
        %v2479 = vsub.s32 %v2478, 2
        %vm2480 = vcmp.gt.s32.totalorder 0, %v2479
        %v2481 = vsel %vm2480, 0, %v2479
        %v2482 = vsub.s32 32, %v2481
        %v2483 = vshll.u32 %v2474, %v2481
        %v2484 = vshrl.u32 %v2466, %v2482
        %v2485 = vor.u32 %v2483, %v2484
        %v2486 = vsub.s32 4294967266, %v2481
        %v2487 = vadd.s32 %v2486, 127
        %v2488 = vshll.u32 %v2487, 23
        %v2489 = vor.u32 4788187, %v2488
        %v2490 = vand.u32 2147483647, %v2489
        %v2492 = vcvt.s32.f32 %v2485
        %v2493 = vmul.f32 %v2492, %v2490
        %v2494 = vxor.u32 %v2493, 2147483648
        %v2495 = vsel %vm2374, %v2494, %v2493
        %v2496 = vsub.s32 4, %v2472
        %v2497 = vsel %vm2374, %v2496, %v2472
        %v2498 = vsel %vm2373, %v1594, %v2495
        %v2499 = vsel %vm2373, 0, %v2497
        %v2500 = vmul.f32 %v2498, %v2498
        %v2501 = vmul.f32 %v2500, -0.001358992
        %v2502 = vadd.f32 %v2501, 0.041655596
        %v2503 = vmul.f32 %v2500, %v2502
        %v2504 = vadd.f32 %v2503, -0.4999988
        %v2505 = vmul.f32 %v2500, %v2504
        %v2506 = vadd.f32 1.0, %v2505
        %v2507 = vmul.f32 %v2498, %v2498
        %v2508 = vmul.f32 %v2507, -0.00019511016
        %v2509 = vadd.f32 %v2508, 0.008332121
        %v2510 = vmul.f32 %v2507, %v2509
        %v2511 = vadd.f32 %v2510, -0.16666654
        %v2512 = vmul.f32 %v2507, %v2511
        %v2513 = vadd.f32 %v2512, 1.0
        %v2514 = vmul.f32 %v2513, %v2498
        %vm2515 = vweird.f32 %v1594
        %v2516 = vadd.s32 %v2499, 3
        %v2517 = vand.u32 %v2516, 3
        %vm2518 = vcmp.lt.s32.totalorder %v2517, 2
        %vm2519 = vcmp.eq.s32.totalorder %v2517, 0
        %v2520 = vxor.u32 %v2514, 2147483648
        %v2521 = vsel %vm2519, %v2506, %v2520
        %vm2522 = vcmp.eq.s32.totalorder %v2517, 2
        %v2523 = vxor.u32 %v2506, 2147483648
        %v2524 = vsel %vm2522, %v2523, %v2514
        %v2525 = vsel %vm2518, %v2521, %v2524
        %v2526 = vsel %vm2515, nan, %v2525
        %v2527 = vand.u32 2147483647, %v1595
        %vm2528 = vcmp.le.f32.partialorder %v2527, 0.7853982
        %vm2529 = vcmp.lt.s32.totalorder %v1595, 0
        %v2530 = vand.u32 %v1595, 2139095040
        %v2531 = vshrl.u32 %v2530, 23
        %v2532 = vsub.s32 %v2531, 127
        %v2533 = vand.u32 2147483647, %v1595
        %v2534 = vand.u32 %v2533, 8388607
        %v2535 = vor.u32 %v2534, 8388608
        %v2536 = vsub.s32 0, %v2535
        %v2537 = vadd.s32 %v2532, 1
        %vm2538 = vcmp.gt.s32.totalorder %v2537, 0
        %v2539 = vsel %vm2538, %v2537, 0
        %v2540 = vshrl.u32 %v2539, 5
        %v2541 = vand.u32 %v2539, 31
        %v2542 = vsub.s32 32, %v2541
        %v2543 = vshrl.u32 683565275, %v2542
        %v2544 = vshll.u32 683565275, %v2541
        %v2545 = vshrl.u32 2475754826, %v2542
        %v2546 = vor.u32 %v2544, %v2545
        %v2547 = vshll.u32 2475754826, %v2541
        %v2548 = vshrl.u32 2131351028, %v2542
        %v2549 = vor.u32 %v2547, %v2548
        %v2550 = vshll.u32 2131351028, %v2541
        %v2551 = vshrl.u32 2102212464, %v2542
        %v2552 = vor.u32 %v2550, %v2551
        %v2553 = vshll.u32 2102212464, %v2541
        %v2554 = vshrl.u32 920167782, %v2542
        %v2555 = vor.u32 %v2553, %v2554
        %v2556 = vshll.u32 920167782, %v2541
        %v2557 = vshrl.u32 1326507024, %v2542
        %v2558 = vor.u32 %v2556, %v2557
        %vm2559 = vcmp.lt.s32.totalorder %v2540, 1
        %vm2560 = vcmp.lt.s32.totalorder %v2540, 2
        %vm2561 = vcmp.lt.s32.totalorder %v2540, 3
        %vm2562 = vcmp.lt.s32.totalorder %v2540, 4
        %v2563 = vsel %vm2559, %v2543, %v2546
        %v2564 = vsel %vm2562, %v2552, 2102212464
        %v2565 = vsel %vm2561, %v2549, %v2564
        %v2566 = vsel %vm2560, %v2563, %v2565
        %v2567 = vsel %vm2559, %v2546, %v2549
        %v2568 = vsel %vm2562, %v2555, 920167782
        %v2569 = vsel %vm2561, %v2552, %v2568
        %v2570 = vsel %vm2560, %v2567, %v2569
        %v2571 = vsel %vm2559, %v2549, %v2552
        %v2572 = vsel %vm2562, %v2558, 1326507024
        %v2573 = vsel %vm2561, %v2555, %v2572
        %v2574 = vsel %vm2560, %v2571, %v2573
        %v2575 = vshll.u32 %v2535, 8
        %v2576 = vand.u32 %v2575, 65535
        %v2577 = vshrl.u32 %v2575, 16
        %v2578 = vand.u32 %v2574, 65535
        %v2579 = vshrl.u32 %v2574, 16
        %v2580 = vmul.u32 %v2576, %v2578
        %v2581 = vmul.u32 %v2576, %v2579
        %v2582 = vmul.u32 %v2577, %v2578
        %v2583 = vmul.u32 %v2577, %v2579
        %v2584 = vshll.u32 %v2581, 16
        %v2585 = vshrl.u32 %v2581, 16
        %v2586 = vshll.u32 %v2582, 16
        %v2587 = vshrl.u32 %v2582, 16
        %vm2588 = vc.u32 %v2580, %v2584
        %v2589 = vsel %vm2588, 1, 0
        %v2590 = vadd.s32 %v2580, %v2584
        %v2591 = vadd.s32 %v2583, %v2589
        %vm2592 = vc.u32 %v2590, %v2586
        %v2593 = vsel %vm2592, 1, 0
        %v2594 = vadd.s32 %v2590, %v2586
        %v2595 = vadd.s32 %v2591, %v2593
        %v2596 = vadd.s32 %v2595, %v2585
        %v2597 = vadd.s32 %v2596, %v2587
        %v2598 = vand.u32 %v2575, 65535
        %v2599 = vshrl.u32 %v2575, 16
        %v2600 = vand.u32 %v2570, 65535
        %v2601 = vshrl.u32 %v2570, 16
        %v2602 = vmul.u32 %v2598, %v2600
        %v2603 = vmul.u32 %v2598, %v2601
        %v2604 = vmul.u32 %v2599, %v2600
        %v2605 = vmul.u32 %v2599, %v2601
        %v2606 = vshll.u32 %v2603, 16
        %v2607 = vshrl.u32 %v2603, 16
        %v2608 = vshll.u32 %v2604, 16
        %v2609 = vshrl.u32 %v2604, 16
        %vm2610 = vc.u32 %v2602, %v2606
        %v2611 = vsel %vm2610, 1, 0
        %v2612 = vadd.s32 %v2602, %v2606
        %v2613 = vadd.s32 %v2605, %v2611
        %vm2614 = vc.u32 %v2612, %v2608
        %v2615 = vsel %vm2614, 1, 0
        %v2616 = vadd.s32 %v2612, %v2608
        %v2617 = vadd.s32 %v2613, %v2615
        %v2618 = vadd.s32 %v2617, %v2607
        %v2619 = vadd.s32 %v2618, %v2609
        %v2620 = vmul.u32 %v2575, %v2566
        %v2621 = vadd.s32 %v2597, %v2616
        %vm2622 = vc.u32 %v2597, %v2616
        %v2623 = vadd.s32 %v2619, 1
        %v2624 = vsel %vm2622, %v2623, %v2619
        %v2625 = vadd.s32 %v2620, %v2624
        %v2626 = vadd.s32 %v2625, 536870912
        %v2627 = vshrl.u32 %v2626, 30
        %v2628 = vshll.u32 %v2627, 30
        %v2629 = vsub.s32 %v2625, %v2628
        %vm2630 = vcmp.lt.s32.totalorder %v2629, 0
        %v2631 = vsub.s32 0, %v2629
        %v2632 = vsel %vm2630, %v2631, %v2629
        %v2633 = vclz %v2632
        %v2634 = vsub.s32 %v2633, 2
        %vm2635 = vcmp.gt.s32.totalorder 0, %v2634
        %v2636 = vsel %vm2635, 0, %v2634
        %v2637 = vsub.s32 32, %v2636
        %v2638 = vshll.u32 %v2629, %v2636
        %v2639 = vshrl.u32 %v2621, %v2637
        %v2640 = vor.u32 %v2638, %v2639
        %v2641 = vsub.s32 4294967266, %v2636
        %v2642 = vadd.s32 %v2641, 127
        %v2643 = vshll.u32 %v2642, 23
        %v2644 = vor.u32 4788187, %v2643
        %v2645 = vand.u32 2147483647, %v2644
        %v2647 = vcvt.s32.f32 %v2640
        %v2648 = vmul.f32 %v2647, %v2645
        %v2649 = vxor.u32 %v2648, 2147483648
        %v2650 = vsel %vm2529, %v2649, %v2648
        %v2651 = vsub.s32 4, %v2627
        %v2652 = vsel %vm2529, %v2651, %v2627
        %v2653 = vsel %vm2528, %v1595, %v2650
        %v2654 = vsel %vm2528, 0, %v2652
        %v2655 = vmul.f32 %v2653, %v2653
        %v2656 = vmul.f32 %v2655, -0.001358992
        %v2657 = vadd.f32 %v2656, 0.041655596
        %v2658 = vmul.f32 %v2655, %v2657
        %v2659 = vadd.f32 %v2658, -0.4999988
        %v2660 = vmul.f32 %v2655, %v2659
        %v2661 = vadd.f32 1.0, %v2660
        %v2662 = vmul.f32 %v2653, %v2653
        %v2663 = vmul.f32 %v2662, -0.00019511016
        %v2664 = vadd.f32 %v2663, 0.008332121
        %v2665 = vmul.f32 %v2662, %v2664
        %v2666 = vadd.f32 %v2665, -0.16666654
        %v2667 = vmul.f32 %v2662, %v2666
        %v2668 = vadd.f32 %v2667, 1.0
        %v2669 = vmul.f32 %v2668, %v2653
        %vm2670 = vweird.f32 %v1595
        %v2671 = vadd.s32 %v2654, 3
        %v2672 = vand.u32 %v2671, 3
        %vm2673 = vcmp.lt.s32.totalorder %v2672, 2
        %vm2674 = vcmp.eq.s32.totalorder %v2672, 0
        %v2675 = vxor.u32 %v2669, 2147483648
        %v2676 = vsel %vm2674, %v2661, %v2675
        %vm2677 = vcmp.eq.s32.totalorder %v2672, 2
        %v2678 = vxor.u32 %v2661, 2147483648
        %v2679 = vsel %vm2677, %v2678, %v2669
        %v2680 = vsel %vm2673, %v2676, %v2679
        %v2681 = vsel %vm2670, nan, %v2680
        %v2682 = vand.u32 2147483647, %v1596
        %vm2683 = vcmp.le.f32.partialorder %v2682, 0.7853982
        %vm2684 = vcmp.lt.s32.totalorder %v1596, 0
        %v2685 = vand.u32 %v1596, 2139095040
        %v2686 = vshrl.u32 %v2685, 23
        %v2687 = vsub.s32 %v2686, 127
        %v2688 = vand.u32 2147483647, %v1596
        %v2689 = vand.u32 %v2688, 8388607
        %v2690 = vor.u32 %v2689, 8388608
        %v2691 = vsub.s32 0, %v2690
        %v2692 = vadd.s32 %v2687, 1
        %vm2693 = vcmp.gt.s32.totalorder %v2692, 0
        %v2694 = vsel %vm2693, %v2692, 0
        %v2695 = vshrl.u32 %v2694, 5
        %v2696 = vand.u32 %v2694, 31
        %v2697 = vsub.s32 32, %v2696
        %v2698 = vshrl.u32 683565275, %v2697
        %v2699 = vshll.u32 683565275, %v2696
        %v2700 = vshrl.u32 2475754826, %v2697
        %v2701 = vor.u32 %v2699, %v2700
        %v2702 = vshll.u32 2475754826, %v2696
        %v2703 = vshrl.u32 2131351028, %v2697
        %v2704 = vor.u32 %v2702, %v2703
        %v2705 = vshll.u32 2131351028, %v2696
        %v2706 = vshrl.u32 2102212464, %v2697
        %v2707 = vor.u32 %v2705, %v2706
        %v2708 = vshll.u32 2102212464, %v2696
        %v2709 = vshrl.u32 920167782, %v2697
        %v2710 = vor.u32 %v2708, %v2709
        %v2711 = vshll.u32 920167782, %v2696
        %v2712 = vshrl.u32 1326507024, %v2697
        %v2713 = vor.u32 %v2711, %v2712
        %vm2714 = vcmp.lt.s32.totalorder %v2695, 1
        %vm2715 = vcmp.lt.s32.totalorder %v2695, 2
        %vm2716 = vcmp.lt.s32.totalorder %v2695, 3
        %vm2717 = vcmp.lt.s32.totalorder %v2695, 4
        %v2718 = vsel %vm2714, %v2698, %v2701
        %v2719 = vsel %vm2717, %v2707, 2102212464
        %v2720 = vsel %vm2716, %v2704, %v2719
        %v2721 = vsel %vm2715, %v2718, %v2720
        %v2722 = vsel %vm2714, %v2701, %v2704
        %v2723 = vsel %vm2717, %v2710, 920167782
        %v2724 = vsel %vm2716, %v2707, %v2723
        %v2725 = vsel %vm2715, %v2722, %v2724
        %v2726 = vsel %vm2714, %v2704, %v2707
        %v2727 = vsel %vm2717, %v2713, 1326507024
        %v2728 = vsel %vm2716, %v2710, %v2727
        %v2729 = vsel %vm2715, %v2726, %v2728
        %v2730 = vshll.u32 %v2690, 8
        %v2731 = vand.u32 %v2730, 65535
        %v2732 = vshrl.u32 %v2730, 16
        %v2733 = vand.u32 %v2729, 65535
        %v2734 = vshrl.u32 %v2729, 16
        %v2735 = vmul.u32 %v2731, %v2733
        %v2736 = vmul.u32 %v2731, %v2734
        %v2737 = vmul.u32 %v2732, %v2733
        %v2738 = vmul.u32 %v2732, %v2734
        %v2739 = vshll.u32 %v2736, 16
        %v2740 = vshrl.u32 %v2736, 16
        %v2741 = vshll.u32 %v2737, 16
        %v2742 = vshrl.u32 %v2737, 16
        %vm2743 = vc.u32 %v2735, %v2739
        %v2744 = vsel %vm2743, 1, 0
        %v2745 = vadd.s32 %v2735, %v2739
        %v2746 = vadd.s32 %v2738, %v2744
        %vm2747 = vc.u32 %v2745, %v2741
        %v2748 = vsel %vm2747, 1, 0
        %v2749 = vadd.s32 %v2745, %v2741
        %v2750 = vadd.s32 %v2746, %v2748
        %v2751 = vadd.s32 %v2750, %v2740
        %v2752 = vadd.s32 %v2751, %v2742
        %v2753 = vand.u32 %v2730, 65535
        %v2754 = vshrl.u32 %v2730, 16
        %v2755 = vand.u32 %v2725, 65535
        %v2756 = vshrl.u32 %v2725, 16
        %v2757 = vmul.u32 %v2753, %v2755
        %v2758 = vmul.u32 %v2753, %v2756
        %v2759 = vmul.u32 %v2754, %v2755
        %v2760 = vmul.u32 %v2754, %v2756
        %v2761 = vshll.u32 %v2758, 16
        %v2762 = vshrl.u32 %v2758, 16
        %v2763 = vshll.u32 %v2759, 16
        %v2764 = vshrl.u32 %v2759, 16
        %vm2765 = vc.u32 %v2757, %v2761
        %v2766 = vsel %vm2765, 1, 0
        %v2767 = vadd.s32 %v2757, %v2761
        %v2768 = vadd.s32 %v2760, %v2766
        %vm2769 = vc.u32 %v2767, %v2763
        %v2770 = vsel %vm2769, 1, 0
        %v2771 = vadd.s32 %v2767, %v2763
        %v2772 = vadd.s32 %v2768, %v2770
        %v2773 = vadd.s32 %v2772, %v2762
        %v2774 = vadd.s32 %v2773, %v2764
        %v2775 = vmul.u32 %v2730, %v2721
        %v2776 = vadd.s32 %v2752, %v2771
        %vm2777 = vc.u32 %v2752, %v2771
        %v2778 = vadd.s32 %v2774, 1
        %v2779 = vsel %vm2777, %v2778, %v2774
        %v2780 = vadd.s32 %v2775, %v2779
        %v2781 = vadd.s32 %v2780, 536870912
        %v2782 = vshrl.u32 %v2781, 30
        %v2783 = vshll.u32 %v2782, 30
        %v2784 = vsub.s32 %v2780, %v2783
        %vm2785 = vcmp.lt.s32.totalorder %v2784, 0
        %v2786 = vsub.s32 0, %v2784
        %v2787 = vsel %vm2785, %v2786, %v2784
        %v2788 = vclz %v2787
        %v2789 = vsub.s32 %v2788, 2
        %vm2790 = vcmp.gt.s32.totalorder 0, %v2789
        %v2791 = vsel %vm2790, 0, %v2789
        %v2792 = vsub.s32 32, %v2791
        %v2793 = vshll.u32 %v2784, %v2791
        %v2794 = vshrl.u32 %v2776, %v2792
        %v2795 = vor.u32 %v2793, %v2794
        %v2796 = vsub.s32 4294967266, %v2791
        %v2797 = vadd.s32 %v2796, 127
        %v2798 = vshll.u32 %v2797, 23
        %v2799 = vor.u32 4788187, %v2798
        %v2800 = vand.u32 2147483647, %v2799
        %v2802 = vcvt.s32.f32 %v2795
        %v2803 = vmul.f32 %v2802, %v2800
        %v2804 = vxor.u32 %v2803, 2147483648
        %v2805 = vsel %vm2684, %v2804, %v2803
        %v2806 = vsub.s32 4, %v2782
        %v2807 = vsel %vm2684, %v2806, %v2782
        %v2808 = vsel %vm2683, %v1596, %v2805
        %v2809 = vsel %vm2683, 0, %v2807
        %v2810 = vmul.f32 %v2808, %v2808
        %v2811 = vmul.f32 %v2810, -0.001358992
        %v2812 = vadd.f32 %v2811, 0.041655596
        %v2813 = vmul.f32 %v2810, %v2812
        %v2814 = vadd.f32 %v2813, -0.4999988
        %v2815 = vmul.f32 %v2810, %v2814
        %v2816 = vadd.f32 1.0, %v2815
        %v2817 = vmul.f32 %v2808, %v2808
        %v2818 = vmul.f32 %v2817, -0.00019511016
        %v2819 = vadd.f32 %v2818, 0.008332121
        %v2820 = vmul.f32 %v2817, %v2819
        %v2821 = vadd.f32 %v2820, -0.16666654
        %v2822 = vmul.f32 %v2817, %v2821
        %v2823 = vadd.f32 %v2822, 1.0
        %v2824 = vmul.f32 %v2823, %v2808
        %vm2825 = vweird.f32 %v1596
        %v2826 = vadd.s32 %v2809, 3
        %v2827 = vand.u32 %v2826, 3
        %vm2828 = vcmp.lt.s32.totalorder %v2827, 2
        %vm2829 = vcmp.eq.s32.totalorder %v2827, 0
        %v2830 = vxor.u32 %v2824, 2147483648
        %v2831 = vsel %vm2829, %v2816, %v2830
        %vm2832 = vcmp.eq.s32.totalorder %v2827, 2
        %v2833 = vxor.u32 %v2816, 2147483648
        %v2834 = vsel %vm2832, %v2833, %v2824
        %v2835 = vsel %vm2828, %v2831, %v2834
        %v2836 = vsel %vm2825, nan, %v2835
        %2837 = vst [vmem:[%s237 + $0x40] sm:$0xff] %v1751
        %2838 = vst [vmem:[%s237 + $0x48] sm:$0xff] %v1906
        %2839 = vst [vmem:[%s237 + $0x50] sm:$0xff] %v2061
        %2840 = vst [vmem:[%s237 + $0x58] sm:$0xff] %v2216
        %2841 = vst [vmem:[%s237 + $0x60] sm:$0xff] %v2371
        %2842 = vst [vmem:[%s237 + $0x68] sm:$0xff] %v2526
        %2843 = vst [vmem:[%s237 + $0x70] sm:$0xff] %v2681
        %2844 = vst [vmem:[%s237 + $0x78] sm:$0xff] %v2836
        %s2845 = sand.u32 %s138, 1
        %s2846 = scalar_lea.sflag [#allocation3], %s2845
        %s2847 = sand.u32 %s138, 1
        %s2848 = smul.addr %s2847, 128
        %s2849 = scalar_lea.vmem [#allocation2], %s2848
        // Predicated region
        $region37: #{tpu_custom_call.1} parent=35 // pred_check
          %p2850 = pneg %p148
        $region38: #{tpu_custom_call.1} parent=35 // pred_check_branch
          %2852 = sbr.rel (%p2850) target = $region40
        $region39: #{tpu_custom_call.1} parent=35 // pred_region
          %s2853 = smul.u32 2, %s23
          %2855 = vsyncadd %s2846, 0
          %s2856 = smul.addr %s22, 16
          %s2857 = sadd.s32 %s2853, %s2856
          %s2858 = smul.addr %s2857, 8
          %s2859 = scalar_lea.hbm %s4, %s2858
          %s2860 = sshll.u32 %s2849, 4
          %s2861 = int_to_ptr.vmem [resolvable:$true] %s2860
          %s2862 = sshll.u32 %s2859, 4
          %s2863 = int_to_ptr.hbm [resolvable:$true] %s2862
          %2868 = dma.vmem_to_hbm [thread:$0]  %s2861, 2048, %s2863, %s2846, 256, 256, 16
        $region40: #{tpu_custom_call.1} parent=35 // pred_fallthru
          _
      $region36: #{tpu_custom_call.1} parent=5 // pred_fallthru
        _
      %p2869 = scmp.le.s32.totalorder 2, %s13
      // Predicated region
      $region41: #{tpu_custom_call.1} parent=5 // pred_check
        %p2870 = pneg %p2869
      $region42: #{tpu_custom_call.1} parent=5 // pred_check_branch
        %2872 = sbr.rel (%p2870) target = $region44
      $region43: #{tpu_custom_call.1} parent=5 // pred_region
        %s2873 = ssub.s32 %s13, 2
        // Predicated region
        $region45: #{tpu_custom_call.1} parent=43 // pred_check
          %p2874 = pneg %p154
        $region46: #{tpu_custom_call.1} parent=43 // pred_check_branch
          %2876 = sbr.rel (%p2874) target = $region48
        $region47: #{tpu_custom_call.1} parent=43 // pred_region
          %s2877 = sand.u32 %s139, 1
          %s2878 = scalar_lea.sflag [#allocation3], %s2877
          %s2879 = sand.u32 %s139, 1
          %s2880 = smul.addr %s2879, 128
          %s2881 = scalar_lea.vmem [#allocation2], %s2880
          %2883 = dma.done %s2878, 2048
        $region48: #{tpu_custom_call.1} parent=43 // pred_fallthru
          _
      $region44: #{tpu_custom_call.1} parent=5 // pred_fallthru
        _
    $region6: #{tpu_custom_call.1} parent=1 // loop_footer
      %s17 = sadd.s32 1, %s13
    $region7: #{tpu_custom_call.1} parent=1 // loop_footer_branch
      %12 = sbr.rel target = $region3
    $region8: #{tpu_custom_call.1} parent=1 // loop_exit
      _
    %2884 = vsyncpa [#allocation3], 1
    %s2885 = scalar_lea.sflag [#allocation3], 1
    %2886 = vsyncpa %s2885, 1

</llo_original>
